<compile_context>
chip_gen: v7x
topology: tpu7x:2x2x1
jax: 0.10.0
libtpu: 0.0.40
codegen_flags: <defaults>
</compile_context>

<pallas_src>
import math
import functools

import jax
import jax.numpy as jnp
from jax import lax
from jax.experimental import pallas as pl
from jax.experimental.pallas import tpu as pltpu


# --------------------------------------------------------------------------
# Kernel helpers
# --------------------------------------------------------------------------
def _layernorm(v, gamma, beta, eps=1e-5):
    mu = jnp.mean(v, axis=-1, keepdims=True)
    var = jnp.mean(jnp.square(v - mu), axis=-1, keepdims=True)
    return (v - mu) * lax.rsqrt(var + eps) * gamma + beta


def _gelu_tanh(x):
    c = math.sqrt(2.0 / math.pi)
    return 0.5 * x * (1.0 + jnp.tanh(c * (x + 0.044715 * x * x * x)))


# --------------------------------------------------------------------------
# Kernel
# --------------------------------------------------------------------------
def transformer_block_kernel(
    sa_ref, sf_ref,              # (1,1) f32 in SMEM: layer scales
    xq_ref,                      # (1, TS, D) f32   query-row tile of x
    xkv_ref,                     # (1, S,  D) f32   full sequence (K/V side)
    g1_ref, be1_ref,             # (1, D) f32       layernorm 1
    wq_ref, wk_ref, wv_ref,      # (D, H*dh) bf16   (wq pre-scaled by 1/sqrt(dh))
    bq_ref, bk_ref, bv_ref,      # (1, H*dh) f32
    wo_ref, bo_ref,              # (H*dh, D) bf16, (1, D) f32
    g2_ref, be2_ref,             # (1, D) f32       layernorm 2
    w1_ref, bf1_ref,             # (D, Dff) bf16, (1, Dff) f32
    w2_ref, bf2_ref,             # (Dff, D) bf16, (1, D) f32
    o_ref,                       # (1, TS, D) f32
    *, num_heads, head_dim, dff_chunk,
):
    sa = sa_ref[0, 0]            # scalar path (SMEM)
    sf = sf_ref[0, 0]

    x_q = xq_ref[0]              # (TS, D) f32
    x_kv = xkv_ref[0]            # (S,  D) f32

    g1 = g1_ref[...]
    be1 = be1_ref[...]

    # ---------------- attention branch: x + sa * attn(LN1(x)) --------------
    xn_q = _layernorm(x_q, g1, be1)
    xn_kv = _layernorm(x_kv, g1, be1)
    xn_q_b = xn_q.astype(jnp.bfloat16)
    xn_kv_b = xn_kv.astype(jnp.bfloat16)

    # Fused head projections: bf16 operands, f32 accumulation.
    q = jnp.dot(xn_q_b, wq_ref[...], preferred_element_type=jnp.float32) + bq_ref[...]
    k = jnp.dot(xn_kv_b, wk_ref[...], preferred_element_type=jnp.float32) + bk_ref[...]
    v = jnp.dot(xn_kv_b, wv_ref[...], preferred_element_type=jnp.float32) + bv_ref[...]
    q_b = q.astype(jnp.bfloat16)     # already includes the 1/sqrt(dh) scale
    k_b = k.astype(jnp.bfloat16)
    v_b = v.astype(jnp.bfloat16)

    # Only the small dh-contraction score/value matmuls remain per-head.
    # TODO(synk): for very long S, add a KV-tile grid axis with online-softmax
    # (flash-style) accumulation instead of full-S keys/values per query tile.
    o_heads = []
    for h in range(num_heads):
        lo, hi = h * head_dim, (h + 1) * head_dim
        qh, kh, vh = q_b[:, lo:hi], k_b[:, lo:hi], v_b[:, lo:hi]
        s = lax.dot_general(qh, kh, (((1,), (1,)), ((), ())),
                            preferred_element_type=jnp.float32)          # (TS, S)
        s = s - jnp.max(s, axis=-1, keepdims=True)
        p = jnp.exp(s)
        p = p * pl.reciprocal(jnp.sum(p, axis=-1, keepdims=True), approx=True)
        o_heads.append(jnp.dot(p.astype(jnp.bfloat16), vh,
                               preferred_element_type=jnp.float32))      # (TS, dh)
    o_cat = jnp.concatenate(o_heads, axis=-1)                            # (TS, H*dh)

    # Single lane-dense output projection.
    attn = jnp.dot(o_cat.astype(jnp.bfloat16), wo_ref[...],
                   preferred_element_type=jnp.float32) + bo_ref[...]

    x1 = x_q + sa * attn

    # ---------------- feed-forward branch: x1 + sf * ff(LN2(x1)) -----------
    xn2_b = _layernorm(x1, g2_ref[...], be2_ref[...]).astype(jnp.bfloat16)

    dff = w1_ref.shape[1]
    h2 = jnp.zeros_like(x1)                                              # (TS, D) f32
    for c in range(0, dff, dff_chunk):                                   # chunked Dff
        h1c = jnp.dot(xn2_b, w1_ref[:, c:c + dff_chunk],
                      preferred_element_type=jnp.float32) + bf1_ref[:, c:c + dff_chunk]
        h1c = _gelu_tanh(h1c)
        h2 = h2 + jnp.dot(h1c.astype(jnp.bfloat16), w2_ref[c:c + dff_chunk, :],
                          preferred_element_type=jnp.float32)
    h2 = h2 + bf2_ref[...]

    o_ref[0] = (x1 + sf * h2).astype(o_ref.dtype)


# --------------------------------------------------------------------------
# Wrapper
# --------------------------------------------------------------------------
def _vmem_limit_bytes():
    # Explicit scoped-VMEM budget instead of the 16/32 MiB default; safe across
    # v5e/v6e (128 MiB) and v7x (64 MiB). Fall back to platform default if the
    # hardware query is unavailable.
    try:
        cap = int(pltpu.get_tpu_info().vmem_capacity_bytes)
        return min((cap * 3) // 4, 96 * 1024 * 1024)
    except Exception:
        return None


def transformer_block(x, params, num_heads):
    B, S, D = x.shape
    HD = params["wq"].shape[1]           # H * dh
    Dff = params["w1"].shape[1]
    dh = HD // num_heads
    assert num_heads * dh == HD

    # Query-row tile (second 'parallel' grid axis). Full sequence for small S.
    TS = S if S <= 128 else 128
    assert S % TS == 0 and (TS == S or TS % 8 == 0)
    dff_chunk = 512 if (Dff > 512 and Dff % 512 == 0) else Dff

    # Fold 1/sqrt(dh) into the query projection (f32), then cast matmul weights
    # to bf16 (accumulation stays f32 inside the kernel). Biases stay f32.
    inv = 1.0 / math.sqrt(dh)
    bf16 = lambda a: a.astype(jnp.bfloat16)
    wq_b = bf16(params["wq"] * inv)
    bq_s = params["bq"] * inv
    wk_b, wv_b = bf16(params["wk"]), bf16(params["wv"])
    wo_b, w1_b, w2_b = bf16(params["wo"]), bf16(params["w1"]), bf16(params["w2"])

    def rep(shape):
        nd = len(shape)
        return pl.BlockSpec(shape, lambda b, qi: (0,) * nd)

    smem = pl.BlockSpec(memory_space=pltpu.MemorySpace.SMEM)

    in_specs = [
        smem, smem,                                           # scale_attn, scale_ff
        pl.BlockSpec((1, TS, D), lambda b, qi: (b, qi, 0)),   # x (query rows)
        pl.BlockSpec((1, S, D), lambda b, qi: (b, 0, 0)),     # x (full seq, K/V)
        rep((1, D)), rep((1, D)),                             # g1, be1
        rep((D, HD)), rep((D, HD)), rep((D, HD)),             # wq, wk, wv
        rep((1, HD)), rep((1, HD)), rep((1, HD)),             # bq, bk, bv
        rep((HD, D)), rep((1, D)),                            # wo, bo
        rep((1, D)), rep((1, D)),                             # g2, be2
        rep((D, Dff)), rep((1, Dff)),                         # w1, bf1
        rep((Dff, D)), rep((1, D)),                           # w2, bf2
    ]
    out_specs = pl.BlockSpec((1, TS, D), lambda b, qi: (b, qi, 0))

    kernel = functools.partial(
        transformer_block_kernel,
        num_heads=num_heads, head_dim=dh, dff_chunk=dff_chunk)

    fn = pl.pallas_call(
        kernel,
        out_shape=jax.ShapeDtypeStruct((B, S, D), jnp.float32),
        grid_spec=pltpu.PrefetchScalarGridSpec(
            num_scalar_prefetch=0,
            grid=(B, S // TS),
            in_specs=in_specs,
            out_specs=out_specs,
        ),
        compiler_params=pltpu.CompilerParams(
            dimension_semantics=("parallel", "parallel"),
            vmem_limit_bytes=_vmem_limit_bytes(),
        ),
    )

    return fn(
        params["scale_attn"], params["scale_ff"],
        x, x,
        params["g1"], params["be1"],
        wq_b, wk_b, wv_b,
        bq_s, params["bk"], params["bv"],
        wo_b, params["bo"],
        params["g2"], params["be2"],
        w1_b, params["bf1"],
        w2_b, params["bf2"],
    )


# --------------------------------------------------------------------------
# Pure-JAX reference (f32) for correctness check
# --------------------------------------------------------------------------
def transformer_block_ref(x, params, num_heads):
    def ln(v, g, b):
        mu = jnp.mean(v, axis=-1, keepdims=True)
        var = jnp.mean(jnp.square(v - mu), axis=-1, keepdims=True)
        return (v - mu) * lax.rsqrt(var + 1e-5) * g + b

    B, S, D = x.shape
    HD = params["wq"].shape[1]
    dh = HD // num_heads

    xn = ln(x, params["g1"], params["be1"])
    q = (xn @ params["wq"] + params["bq"]).reshape(B, S, num_heads, dh)
    k = (xn @ params["wk"] + params["bk"]).reshape(B, S, num_heads, dh)
    v = (xn @ params["wv"] + params["bv"]).reshape(B, S, num_heads, dh)
    s = jnp.einsum("bqhe,bkhe->bhqk", q, k) / math.sqrt(dh)
    p = jax.nn.softmax(s, axis=-1)
    o = jnp.einsum("bhqk,bkhe->bqhe", p, v).reshape(B, S, HD)
    attn = o @ params["wo"] + params["bo"]
    x1 = x + params["scale_attn"][0, 0] * attn

    xn2 = ln(x1, params["g2"], params["be2"])
    c = math.sqrt(2.0 / math.pi)
    h1 = xn2 @ params["w1"] + params["bf1"]
    h1 = 0.5 * h1 * (1.0 + jnp.tanh(c * (h1 + 0.044715 * h1 ** 3)))
    h2 = h1 @ params["w2"] + params["bf2"]
    return x1 + params["scale_ff"][0, 0] * h2


# --------------------------------------------------------------------------
# Main
# --------------------------------------------------------------------------
if __name__ == "__main__":
    B, S, D, H = 2, 8, 32, 4
    dh = D // H
    HD = H * dh
    Dff = 4 * D

    key = jax.random.PRNGKey(0)
    keys = jax.random.split(key, 16)

    def rnd(k, shape, scale=0.02):
        return scale * jax.random.normal(k, shape, dtype=jnp.float32)

    params = {
        "g1": jnp.ones((1, D), jnp.float32) + rnd(keys[0], (1, D), 0.1),
        "be1": rnd(keys[1], (1, D), 0.1),
        "wq": rnd(keys[2], (D, HD)),
        "bq": rnd(keys[3], (1, HD)),
        "wk": rnd(keys[4], (D, HD)),
        "bk": rnd(keys[5], (1, HD)),
        "wv": rnd(keys[6], (D, HD)),
        "bv": rnd(keys[7], (1, HD)),
        "wo": rnd(keys[8], (HD, D)),
        "bo": rnd(keys[9], (1, D)),
        "g2": jnp.ones((1, D), jnp.float32) + rnd(keys[10], (1, D), 0.1),
        "be2": rnd(keys[11], (1, D), 0.1),
        "w1": rnd(keys[12], (D, Dff)),
        "bf1": rnd(keys[13], (1, Dff)),
        "w2": rnd(keys[14], (Dff, D)),
        "bf2": rnd(keys[15], (1, D)),
        # trainable layer-scales, init 1e-2 (as in the PyTorch module)
        "scale_attn": jnp.full((1, 1), 0.01, jnp.float32),
        "scale_ff": jnp.full((1, 1), 0.01, jnp.float32),
    }

    x = jax.random.normal(jax.random.PRNGKey(42), (B, S, D), dtype=jnp.float32)

    out = transformer_block(x, params, num_heads=H)
    out = jax.block_until_ready(out)

    ref = transformer_block_ref(x, params, num_heads=H)
    assert out.shape == (B, S, D)
    # Kernel uses bf16 matmul operands (f32 accumulation); reference is pure f32.
    assert jnp.allclose(out, ref, atol=2e-3, rtol=2e-3), "mismatch vs JAX reference"

    print("KERNEL_OK")
</pallas_src>

<mosaic_0001>
module attributes {stable_mosaic.version = 11 : i64} {
  func.func @transformer_block_kernel(%arg0: i32, %arg1: i32, %arg2: memref<1x1xf32, #tpu.memory_space<smem>>, %arg3: memref<1x1xf32, #tpu.memory_space<smem>>, %arg4: memref<1x8x32xf32, #tpu.memory_space<vmem>>, %arg5: memref<1x8x32xf32, #tpu.memory_space<vmem>>, %arg6: memref<1x32xf32, #tpu.memory_space<vmem>>, %arg7: memref<1x32xf32, #tpu.memory_space<vmem>>, %arg8: memref<32x32xbf16, #tpu.memory_space<vmem>>, %arg9: memref<32x32xbf16, #tpu.memory_space<vmem>>, %arg10: memref<32x32xbf16, #tpu.memory_space<vmem>>, %arg11: memref<1x32xf32, #tpu.memory_space<vmem>>, %arg12: memref<1x32xf32, #tpu.memory_space<vmem>>, %arg13: memref<1x32xf32, #tpu.memory_space<vmem>>, %arg14: memref<32x32xbf16, #tpu.memory_space<vmem>>, %arg15: memref<1x32xf32, #tpu.memory_space<vmem>>, %arg16: memref<1x32xf32, #tpu.memory_space<vmem>>, %arg17: memref<1x32xf32, #tpu.memory_space<vmem>>, %arg18: memref<32x128xbf16, #tpu.memory_space<vmem>>, %arg19: memref<1x128xf32, #tpu.memory_space<vmem>>, %arg20: memref<128x32xbf16, #tpu.memory_space<vmem>>, %arg21: memref<1x32xf32, #tpu.memory_space<vmem>>, %arg22: memref<1x8x32xf32, #tpu.memory_space<vmem>>) attributes {dimension_semantics = [#tpu.dimension_semantics<parallel>, #tpu.dimension_semantics<parallel>], iteration_bounds = array<i64: 2, 1>, scalar_prefetch = 0 : i64, scratch_operands = 0 : i64, tpu.core_type = #tpu.core_type<tc>, window_params = [{transform_indices = @transform_0, window_bounds = array<i64: 1, 1>}, {transform_indices = @transform_1, window_bounds = array<i64: 1, 1>}, {transform_indices = @transform_2, window_bounds = array<i64: 1, 8, 32>}, {transform_indices = @transform_3, window_bounds = array<i64: 1, 8, 32>}, {pipeline_mode = #tpu.pipeline_mode<synchronous>, transform_indices = @transform_4, window_bounds = array<i64: 1, 32>}, {pipeline_mode = #tpu.pipeline_mode<synchronous>, transform_indices = @transform_5, window_bounds = array<i64: 1, 32>}, {pipeline_mode = #tpu.pipeline_mode<synchronous>, transform_indices = @transform_6, window_bounds = array<i64: 32, 32>}, {pipeline_mode = #tpu.pipeline_mode<synchronous>, transform_indices = @transform_7, window_bounds = array<i64: 32, 32>}, {pipeline_mode = #tpu.pipeline_mode<synchronous>, transform_indices = @transform_8, window_bounds = array<i64: 32, 32>}, {pipeline_mode = #tpu.pipeline_mode<synchronous>, transform_indices = @transform_9, window_bounds = array<i64: 1, 32>}, {pipeline_mode = #tpu.pipeline_mode<synchronous>, transform_indices = @transform_10, window_bounds = array<i64: 1, 32>}, {pipeline_mode = #tpu.pipeline_mode<synchronous>, transform_indices = @transform_11, window_bounds = array<i64: 1, 32>}, {pipeline_mode = #tpu.pipeline_mode<synchronous>, transform_indices = @transform_12, window_bounds = array<i64: 32, 32>}, {pipeline_mode = #tpu.pipeline_mode<synchronous>, transform_indices = @transform_13, window_bounds = array<i64: 1, 32>}, {pipeline_mode = #tpu.pipeline_mode<synchronous>, transform_indices = @transform_14, window_bounds = array<i64: 1, 32>}, {pipeline_mode = #tpu.pipeline_mode<synchronous>, transform_indices = @transform_15, window_bounds = array<i64: 1, 32>}, {pipeline_mode = #tpu.pipeline_mode<synchronous>, transform_indices = @transform_16, window_bounds = array<i64: 32, 128>}, {pipeline_mode = #tpu.pipeline_mode<synchronous>, transform_indices = @transform_17, window_bounds = array<i64: 1, 128>}, {pipeline_mode = #tpu.pipeline_mode<synchronous>, transform_indices = @transform_18, window_bounds = array<i64: 128, 32>}, {pipeline_mode = #tpu.pipeline_mode<synchronous>, transform_indices = @transform_19, window_bounds = array<i64: 1, 32>}, {transform_indices = @transform_20, window_bounds = array<i64: 1, 8, 32>}]} {
    %c0 = arith.constant 0 : index
    %c0_0 = arith.constant 0 : index
    %0 = memref.load %arg2[%c0, %c0_0] : memref<1x1xf32, #tpu.memory_space<smem>>
    %c0_1 = arith.constant 0 : index
    %c0_2 = arith.constant 0 : index
    %1 = memref.load %arg3[%c0_1, %c0_2] : memref<1x1xf32, #tpu.memory_space<smem>>
    %c0_3 = arith.constant 0 : index
    %c0_4 = arith.constant 0 : index
    %c0_5 = arith.constant 0 : index
    %2 = vector.load %arg4[%c0_3, %c0_4, %c0_5] : memref<1x8x32xf32, #tpu.memory_space<vmem>>, vector<1x8x32xf32>
    %3 = vector.shape_cast %2 : vector<1x8x32xf32> to vector<8x32xf32>
    %c0_6 = arith.constant 0 : index
    %c0_7 = arith.constant 0 : index
    %c0_8 = arith.constant 0 : index
    %4 = vector.load %arg5[%c0_6, %c0_7, %c0_8] : memref<1x8x32xf32, #tpu.memory_space<vmem>>, vector<1x8x32xf32>
    %5 = vector.shape_cast %4 : vector<1x8x32xf32> to vector<8x32xf32>
    %c0_9 = arith.constant 0 : index
    %c0_10 = arith.constant 0 : index
    %6 = vector.load %arg6[%c0_9, %c0_10] : memref<1x32xf32, #tpu.memory_space<vmem>>, vector<1x32xf32>
    %c0_11 = arith.constant 0 : index
    %c0_12 = arith.constant 0 : index
    %7 = vector.load %arg7[%c0_11, %c0_12] : memref<1x32xf32, #tpu.memory_space<vmem>>, vector<1x32xf32>
    %cst = arith.constant dense<0.000000e+00> : vector<8xf32>
    %8 = vector.multi_reduction <add>, %3, %cst [1] : vector<8x32xf32> to vector<8xf32>
    %9 = vector.shape_cast %8 : vector<8xf32> to vector<8x1xf32>
    %cst_13 = arith.constant 3.200000e+01 : f32
    %10 = vector.broadcast %cst_13 : f32 to vector<8x1xf32>
    %11 = arith.divf %9, %10 : vector<8x1xf32>
    %12 = vector.broadcast %11 : vector<8x1xf32> to vector<8x32xf32>
    %13 = arith.subf %3, %12 : vector<8x32xf32>
    %14 = arith.mulf %13, %13 : vector<8x32xf32>
    %cst_14 = arith.constant dense<0.000000e+00> : vector<8xf32>
    %15 = vector.multi_reduction <add>, %14, %cst_14 [1] : vector<8x32xf32> to vector<8xf32>
    %16 = vector.shape_cast %15 : vector<8xf32> to vector<8x1xf32>
    %cst_15 = arith.constant 3.200000e+01 : f32
    %17 = vector.broadcast %cst_15 : f32 to vector<8x1xf32>
    %18 = arith.divf %16, %17 : vector<8x1xf32>
    %19 = vector.broadcast %11 : vector<8x1xf32> to vector<8x32xf32>
    %20 = arith.subf %3, %19 : vector<8x32xf32>
    %cst_16 = arith.constant 9.99999974E-6 : f32
    %21 = vector.broadcast %cst_16 : f32 to vector<8x1xf32>
    %22 = arith.addf %18, %21 : vector<8x1xf32>
    %23 = math.rsqrt %22 : vector<8x1xf32>
    %24 = vector.broadcast %23 : vector<8x1xf32> to vector<8x32xf32>
    %25 = arith.mulf %20, %24 : vector<8x32xf32>
    %26 = vector.broadcast %6 : vector<1x32xf32> to vector<8x32xf32>
    %27 = arith.mulf %25, %26 : vector<8x32xf32>
    %28 = vector.broadcast %7 : vector<1x32xf32> to vector<8x32xf32>
    %29 = arith.addf %27, %28 : vector<8x32xf32>
    %cst_17 = arith.constant dense<0.000000e+00> : vector<8xf32>
    %30 = vector.multi_reduction <add>, %5, %cst_17 [1] : vector<8x32xf32> to vector<8xf32>
    %31 = vector.shape_cast %30 : vector<8xf32> to vector<8x1xf32>
    %cst_18 = arith.constant 3.200000e+01 : f32
    %32 = vector.broadcast %cst_18 : f32 to vector<8x1xf32>
    %33 = arith.divf %31, %32 : vector<8x1xf32>
    %34 = vector.broadcast %33 : vector<8x1xf32> to vector<8x32xf32>
    %35 = arith.subf %5, %34 : vector<8x32xf32>
    %36 = arith.mulf %35, %35 : vector<8x32xf32>
    %cst_19 = arith.constant dense<0.000000e+00> : vector<8xf32>
    %37 = vector.multi_reduction <add>, %36, %cst_19 [1] : vector<8x32xf32> to vector<8xf32>
    %38 = vector.shape_cast %37 : vector<8xf32> to vector<8x1xf32>
    %cst_20 = arith.constant 3.200000e+01 : f32
    %39 = vector.broadcast %cst_20 : f32 to vector<8x1xf32>
    %40 = arith.divf %38, %39 : vector<8x1xf32>
    %41 = vector.broadcast %33 : vector<8x1xf32> to vector<8x32xf32>
    %42 = arith.subf %5, %41 : vector<8x32xf32>
    %cst_21 = arith.constant 9.99999974E-6 : f32
    %43 = vector.broadcast %cst_21 : f32 to vector<8x1xf32>
    %44 = arith.addf %40, %43 : vector<8x1xf32>
    %45 = math.rsqrt %44 : vector<8x1xf32>
    %46 = vector.broadcast %45 : vector<8x1xf32> to vector<8x32xf32>
    %47 = arith.mulf %42, %46 : vector<8x32xf32>
    %48 = vector.broadcast %6 : vector<1x32xf32> to vector<8x32xf32>
    %49 = arith.mulf %47, %48 : vector<8x32xf32>
    %50 = vector.broadcast %7 : vector<1x32xf32> to vector<8x32xf32>
    %51 = arith.addf %49, %50 : vector<8x32xf32>
    %52 = arith.truncf %29 : vector<8x32xf32> to vector<8x32xbf16>
    %53 = arith.truncf %51 : vector<8x32xf32> to vector<8x32xbf16>
    %c0_22 = arith.constant 0 : index
    %c0_23 = arith.constant 0 : index
    %54 = vector.load %arg8[%c0_22, %c0_23] : memref<32x32xbf16, #tpu.memory_space<vmem>>, vector<32x32xbf16>
    %cst_24 = arith.constant dense<0.000000e+00> : vector<8x32xf32>
    %55 = tpu.matmul %52, %54, %cst_24 {dimension_numbers = #tpu.dot_dimension_numbers<[1], [0], [0], [1], [0, 0, 1, 1], [], []>} : vector<8x32xbf16>, vector<32x32xbf16>, vector<8x32xf32> -> vector<8x32xf32>
    %c0_25 = arith.constant 0 : index
    %c0_26 = arith.constant 0 : index
    %56 = vector.load %arg11[%c0_25, %c0_26] : memref<1x32xf32, #tpu.memory_space<vmem>>, vector<1x32xf32>
    %57 = vector.broadcast %56 : vector<1x32xf32> to vector<8x32xf32>
    %58 = arith.addf %55, %57 : vector<8x32xf32>
    %c0_27 = arith.constant 0 : index
    %c0_28 = arith.constant 0 : index
    %59 = vector.load %arg9[%c0_27, %c0_28] : memref<32x32xbf16, #tpu.memory_space<vmem>>, vector<32x32xbf16>
    %cst_29 = arith.constant dense<0.000000e+00> : vector<8x32xf32>
    %60 = tpu.matmul %53, %59, %cst_29 {dimension_numbers = #tpu.dot_dimension_numbers<[1], [0], [0], [1], [0, 0, 1, 1], [], []>} : vector<8x32xbf16>, vector<32x32xbf16>, vector<8x32xf32> -> vector<8x32xf32>
    %c0_30 = arith.constant 0 : index
    %c0_31 = arith.constant 0 : index
    %61 = vector.load %arg12[%c0_30, %c0_31] : memref<1x32xf32, #tpu.memory_space<vmem>>, vector<1x32xf32>
    %62 = vector.broadcast %61 : vector<1x32xf32> to vector<8x32xf32>
    %63 = arith.addf %60, %62 : vector<8x32xf32>
    %c0_32 = arith.constant 0 : index
    %c0_33 = arith.constant 0 : index
    %64 = vector.load %arg10[%c0_32, %c0_33] : memref<32x32xbf16, #tpu.memory_space<vmem>>, vector<32x32xbf16>
    %cst_34 = arith.constant dense<0.000000e+00> : vector<8x32xf32>
    %65 = tpu.matmul %53, %64, %cst_34 {dimension_numbers = #tpu.dot_dimension_numbers<[1], [0], [0], [1], [0, 0, 1, 1], [], []>} : vector<8x32xbf16>, vector<32x32xbf16>, vector<8x32xf32> -> vector<8x32xf32>
    %c0_35 = arith.constant 0 : index
    %c0_36 = arith.constant 0 : index
    %66 = vector.load %arg13[%c0_35, %c0_36] : memref<1x32xf32, #tpu.memory_space<vmem>>, vector<1x32xf32>
    %67 = vector.broadcast %66 : vector<1x32xf32> to vector<8x32xf32>
    %68 = arith.addf %65, %67 : vector<8x32xf32>
    %69 = arith.truncf %58 : vector<8x32xf32> to vector<8x32xbf16>
    %70 = arith.truncf %63 : vector<8x32xf32> to vector<8x32xbf16>
    %71 = arith.truncf %68 : vector<8x32xf32> to vector<8x32xbf16>
    %72 = vector.extract_strided_slice %69 {offsets = [0, 0], sizes = [8, 8], strides = [1, 1]} : vector<8x32xbf16> to vector<8x8xbf16>
    %73 = vector.extract_strided_slice %70 {offsets = [0, 0], sizes = [8, 8], strides = [1, 1]} : vector<8x32xbf16> to vector<8x8xbf16>
    %74 = vector.extract_strided_slice %71 {offsets = [0, 0], sizes = [8, 8], strides = [1, 1]} : vector<8x32xbf16> to vector<8x8xbf16>
    %cst_37 = arith.constant dense<0.000000e+00> : vector<8x8xf32>
    %75 = tpu.matmul %72, %73, %cst_37 {dimension_numbers = #tpu.dot_dimension_numbers<[1], [1], [0], [0], [0, 0, 1, 0], [], []>} : vector<8x8xbf16>, vector<8x8xbf16>, vector<8x8xf32> -> vector<8x8xf32>
    %cst_38 = arith.constant dense<0xFF800000> : vector<8xf32>
    %76 = vector.multi_reduction <maximumf>, %75, %cst_38 [1] : vector<8x8xf32> to vector<8xf32>
    %77 = vector.shape_cast %76 : vector<8xf32> to vector<8x1xf32>
    %78 = vector.broadcast %77 : vector<8x1xf32> to vector<8x8xf32>
    %79 = arith.subf %75, %78 : vector<8x8xf32>
    %80 = math.exp %79 : vector<8x8xf32>
    %cst_39 = arith.constant dense<0.000000e+00> : vector<8xf32>
    %81 = vector.multi_reduction <add>, %80, %cst_39 [1] : vector<8x8xf32> to vector<8xf32>
    %82 = vector.shape_cast %81 : vector<8xf32> to vector<8x1xf32>
    %83 = tpu.reciprocal %82 {approx = true} : vector<8x1xf32> -> vector<8x1xf32>
    %84 = vector.broadcast %83 : vector<8x1xf32> to vector<8x8xf32>
    %85 = arith.mulf %80, %84 : vector<8x8xf32>
    %86 = arith.truncf %85 : vector<8x8xf32> to vector<8x8xbf16>
    %cst_40 = arith.constant dense<0.000000e+00> : vector<8x8xf32>
    %87 = tpu.matmul %86, %74, %cst_40 {dimension_numbers = #tpu.dot_dimension_numbers<[1], [0], [0], [1], [0, 0, 1, 1], [], []>} : vector<8x8xbf16>, vector<8x8xbf16>, vector<8x8xf32> -> vector<8x8xf32>
    %88 = vector.extract_strided_slice %69 {offsets = [0, 8], sizes = [8, 8], strides = [1, 1]} : vector<8x32xbf16> to vector<8x8xbf16>
    %89 = vector.extract_strided_slice %70 {offsets = [0, 8], sizes = [8, 8], strides = [1, 1]} : vector<8x32xbf16> to vector<8x8xbf16>
    %90 = vector.extract_strided_slice %71 {offsets = [0, 8], sizes = [8, 8], strides = [1, 1]} : vector<8x32xbf16> to vector<8x8xbf16>
    %cst_41 = arith.constant dense<0.000000e+00> : vector<8x8xf32>
    %91 = tpu.matmul %88, %89, %cst_41 {dimension_numbers = #tpu.dot_dimension_numbers<[1], [1], [0], [0], [0, 0, 1, 0], [], []>} : vector<8x8xbf16>, vector<8x8xbf16>, vector<8x8xf32> -> vector<8x8xf32>
    %cst_42 = arith.constant dense<0xFF800000> : vector<8xf32>
    %92 = vector.multi_reduction <maximumf>, %91, %cst_42 [1] : vector<8x8xf32> to vector<8xf32>
    %93 = vector.shape_cast %92 : vector<8xf32> to vector<8x1xf32>
    %94 = vector.broadcast %93 : vector<8x1xf32> to vector<8x8xf32>
    %95 = arith.subf %91, %94 : vector<8x8xf32>
    %96 = math.exp %95 : vector<8x8xf32>
    %cst_43 = arith.constant dense<0.000000e+00> : vector<8xf32>
    %97 = vector.multi_reduction <add>, %96, %cst_43 [1] : vector<8x8xf32> to vector<8xf32>
    %98 = vector.shape_cast %97 : vector<8xf32> to vector<8x1xf32>
    %99 = tpu.reciprocal %98 {approx = true} : vector<8x1xf32> -> vector<8x1xf32>
    %100 = vector.broadcast %99 : vector<8x1xf32> to vector<8x8xf32>
    %101 = arith.mulf %96, %100 : vector<8x8xf32>
    %102 = arith.truncf %101 : vector<8x8xf32> to vector<8x8xbf16>
    %cst_44 = arith.constant dense<0.000000e+00> : vector<8x8xf32>
    %103 = tpu.matmul %102, %90, %cst_44 {dimension_numbers = #tpu.dot_dimension_numbers<[1], [0], [0], [1], [0, 0, 1, 1], [], []>} : vector<8x8xbf16>, vector<8x8xbf16>, vector<8x8xf32> -> vector<8x8xf32>
    %104 = vector.extract_strided_slice %69 {offsets = [0, 16], sizes = [8, 8], strides = [1, 1]} : vector<8x32xbf16> to vector<8x8xbf16>
    %105 = vector.extract_strided_slice %70 {offsets = [0, 16], sizes = [8, 8], strides = [1, 1]} : vector<8x32xbf16> to vector<8x8xbf16>
    %106 = vector.extract_strided_slice %71 {offsets = [0, 16], sizes = [8, 8], strides = [1, 1]} : vector<8x32xbf16> to vector<8x8xbf16>
    %cst_45 = arith.constant dense<0.000000e+00> : vector<8x8xf32>
    %107 = tpu.matmul %104, %105, %cst_45 {dimension_numbers = #tpu.dot_dimension_numbers<[1], [1], [0], [0], [0, 0, 1, 0], [], []>} : vector<8x8xbf16>, vector<8x8xbf16>, vector<8x8xf32> -> vector<8x8xf32>
    %cst_46 = arith.constant dense<0xFF800000> : vector<8xf32>
    %108 = vector.multi_reduction <maximumf>, %107, %cst_46 [1] : vector<8x8xf32> to vector<8xf32>
    %109 = vector.shape_cast %108 : vector<8xf32> to vector<8x1xf32>
    %110 = vector.broadcast %109 : vector<8x1xf32> to vector<8x8xf32>
    %111 = arith.subf %107, %110 : vector<8x8xf32>
    %112 = math.exp %111 : vector<8x8xf32>
    %cst_47 = arith.constant dense<0.000000e+00> : vector<8xf32>
    %113 = vector.multi_reduction <add>, %112, %cst_47 [1] : vector<8x8xf32> to vector<8xf32>
    %114 = vector.shape_cast %113 : vector<8xf32> to vector<8x1xf32>
    %115 = tpu.reciprocal %114 {approx = true} : vector<8x1xf32> -> vector<8x1xf32>
    %116 = vector.broadcast %115 : vector<8x1xf32> to vector<8x8xf32>
    %117 = arith.mulf %112, %116 : vector<8x8xf32>
    %118 = arith.truncf %117 : vector<8x8xf32> to vector<8x8xbf16>
    %cst_48 = arith.constant dense<0.000000e+00> : vector<8x8xf32>
    %119 = tpu.matmul %118, %106, %cst_48 {dimension_numbers = #tpu.dot_dimension_numbers<[1], [0], [0], [1], [0, 0, 1, 1], [], []>} : vector<8x8xbf16>, vector<8x8xbf16>, vector<8x8xf32> -> vector<8x8xf32>
    %120 = vector.extract_strided_slice %69 {offsets = [0, 24], sizes = [8, 8], strides = [1, 1]} : vector<8x32xbf16> to vector<8x8xbf16>
    %121 = vector.extract_strided_slice %70 {offsets = [0, 24], sizes = [8, 8], strides = [1, 1]} : vector<8x32xbf16> to vector<8x8xbf16>
    %122 = vector.extract_strided_slice %71 {offsets = [0, 24], sizes = [8, 8], strides = [1, 1]} : vector<8x32xbf16> to vector<8x8xbf16>
    %cst_49 = arith.constant dense<0.000000e+00> : vector<8x8xf32>
    %123 = tpu.matmul %120, %121, %cst_49 {dimension_numbers = #tpu.dot_dimension_numbers<[1], [1], [0], [0], [0, 0, 1, 0], [], []>} : vector<8x8xbf16>, vector<8x8xbf16>, vector<8x8xf32> -> vector<8x8xf32>
    %cst_50 = arith.constant dense<0xFF800000> : vector<8xf32>
    %124 = vector.multi_reduction <maximumf>, %123, %cst_50 [1] : vector<8x8xf32> to vector<8xf32>
    %125 = vector.shape_cast %124 : vector<8xf32> to vector<8x1xf32>
    %126 = vector.broadcast %125 : vector<8x1xf32> to vector<8x8xf32>
    %127 = arith.subf %123, %126 : vector<8x8xf32>
    %128 = math.exp %127 : vector<8x8xf32>
    %cst_51 = arith.constant dense<0.000000e+00> : vector<8xf32>
    %129 = vector.multi_reduction <add>, %128, %cst_51 [1] : vector<8x8xf32> to vector<8xf32>
    %130 = vector.shape_cast %129 : vector<8xf32> to vector<8x1xf32>
    %131 = tpu.reciprocal %130 {approx = true} : vector<8x1xf32> -> vector<8x1xf32>
    %132 = vector.broadcast %131 : vector<8x1xf32> to vector<8x8xf32>
    %133 = arith.mulf %128, %132 : vector<8x8xf32>
    %134 = arith.truncf %133 : vector<8x8xf32> to vector<8x8xbf16>
    %cst_52 = arith.constant dense<0.000000e+00> : vector<8x8xf32>
    %135 = tpu.matmul %134, %122, %cst_52 {dimension_numbers = #tpu.dot_dimension_numbers<[1], [0], [0], [1], [0, 0, 1, 1], [], []>} : vector<8x8xbf16>, vector<8x8xbf16>, vector<8x8xf32> -> vector<8x8xf32>
    %136 = tpu.concatenate %87, %103, %119, %135 in 1 : vector<8x8xf32>, vector<8x8xf32>, vector<8x8xf32>, vector<8x8xf32> -> vector<8x32xf32>
    %137 = arith.truncf %136 : vector<8x32xf32> to vector<8x32xbf16>
    %c0_53 = arith.constant 0 : index
    %c0_54 = arith.constant 0 : index
    %138 = vector.load %arg14[%c0_53, %c0_54] : memref<32x32xbf16, #tpu.memory_space<vmem>>, vector<32x32xbf16>
    %cst_55 = arith.constant dense<0.000000e+00> : vector<8x32xf32>
    %139 = tpu.matmul %137, %138, %cst_55 {dimension_numbers = #tpu.dot_dimension_numbers<[1], [0], [0], [1], [0, 0, 1, 1], [], []>} : vector<8x32xbf16>, vector<32x32xbf16>, vector<8x32xf32> -> vector<8x32xf32>
    %c0_56 = arith.constant 0 : index
    %c0_57 = arith.constant 0 : index
    %140 = vector.load %arg15[%c0_56, %c0_57] : memref<1x32xf32, #tpu.memory_space<vmem>>, vector<1x32xf32>
    %141 = vector.broadcast %140 : vector<1x32xf32> to vector<8x32xf32>
    %142 = arith.addf %139, %141 : vector<8x32xf32>
    %143 = vector.broadcast %0 : f32 to vector<8x32xf32>
    %144 = arith.mulf %143, %142 : vector<8x32xf32>
    %145 = arith.addf %3, %144 : vector<8x32xf32>
    %c0_58 = arith.constant 0 : index
    %c0_59 = arith.constant 0 : index
    %146 = vector.load %arg16[%c0_58, %c0_59] : memref<1x32xf32, #tpu.memory_space<vmem>>, vector<1x32xf32>
    %c0_60 = arith.constant 0 : index
    %c0_61 = arith.constant 0 : index
    %147 = vector.load %arg17[%c0_60, %c0_61] : memref<1x32xf32, #tpu.memory_space<vmem>>, vector<1x32xf32>
    %cst_62 = arith.constant dense<0.000000e+00> : vector<8xf32>
    %148 = vector.multi_reduction <add>, %145, %cst_62 [1] : vector<8x32xf32> to vector<8xf32>
    %149 = vector.shape_cast %148 : vector<8xf32> to vector<8x1xf32>
    %cst_63 = arith.constant 3.200000e+01 : f32
    %150 = vector.broadcast %cst_63 : f32 to vector<8x1xf32>
    %151 = arith.divf %149, %150 : vector<8x1xf32>
    %152 = vector.broadcast %151 : vector<8x1xf32> to vector<8x32xf32>
    %153 = arith.subf %145, %152 : vector<8x32xf32>
    %154 = arith.mulf %153, %153 : vector<8x32xf32>
    %cst_64 = arith.constant dense<0.000000e+00> : vector<8xf32>
    %155 = vector.multi_reduction <add>, %154, %cst_64 [1] : vector<8x32xf32> to vector<8xf32>
    %156 = vector.shape_cast %155 : vector<8xf32> to vector<8x1xf32>
    %cst_65 = arith.constant 3.200000e+01 : f32
    %157 = vector.broadcast %cst_65 : f32 to vector<8x1xf32>
    %158 = arith.divf %156, %157 : vector<8x1xf32>
    %159 = vector.broadcast %151 : vector<8x1xf32> to vector<8x32xf32>
    %160 = arith.subf %145, %159 : vector<8x32xf32>
    %cst_66 = arith.constant 9.99999974E-6 : f32
    %161 = vector.broadcast %cst_66 : f32 to vector<8x1xf32>
    %162 = arith.addf %158, %161 : vector<8x1xf32>
    %163 = math.rsqrt %162 : vector<8x1xf32>
    %164 = vector.broadcast %163 : vector<8x1xf32> to vector<8x32xf32>
    %165 = arith.mulf %160, %164 : vector<8x32xf32>
    %166 = vector.broadcast %146 : vector<1x32xf32> to vector<8x32xf32>
    %167 = arith.mulf %165, %166 : vector<8x32xf32>
    %168 = vector.broadcast %147 : vector<1x32xf32> to vector<8x32xf32>
    %169 = arith.addf %167, %168 : vector<8x32xf32>
    %170 = arith.truncf %169 : vector<8x32xf32> to vector<8x32xbf16>
    %cst_67 = arith.constant 0.000000e+00 : f32
    %171 = vector.broadcast %cst_67 : f32 to vector<8x32xf32>
    %c0_68 = arith.constant 0 : index
    %c0_69 = arith.constant 0 : index
    %172 = vector.load %arg18[%c0_68, %c0_69] : memref<32x128xbf16, #tpu.memory_space<vmem>>, vector<32x128xbf16>
    %cst_70 = arith.constant dense<0.000000e+00> : vector<8x128xf32>
    %173 = tpu.matmul %170, %172, %cst_70 {dimension_numbers = #tpu.dot_dimension_numbers<[1], [0], [0], [1], [0, 0, 1, 1], [], []>} : vector<8x32xbf16>, vector<32x128xbf16>, vector<8x128xf32> -> vector<8x128xf32>
    %c0_71 = arith.constant 0 : index
    %c0_72 = arith.constant 0 : index
    %174 = vector.load %arg19[%c0_71, %c0_72] : memref<1x128xf32, #tpu.memory_space<vmem>>, vector<1x128xf32>
    %175 = vector.broadcast %174 : vector<1x128xf32> to vector<8x128xf32>
    %176 = arith.addf %173, %175 : vector<8x128xf32>
    %cst_73 = arith.constant 5.000000e-01 : f32
    %177 = vector.broadcast %cst_73 : f32 to vector<8x128xf32>
    %178 = arith.mulf %177, %176 : vector<8x128xf32>
    %cst_74 = arith.constant 4.471500e-02 : f32
    %179 = vector.broadcast %cst_74 : f32 to vector<8x128xf32>
    %180 = arith.mulf %179, %176 : vector<8x128xf32>
    %181 = arith.mulf %180, %176 : vector<8x128xf32>
    %182 = arith.mulf %181, %176 : vector<8x128xf32>
    %183 = arith.addf %176, %182 : vector<8x128xf32>
    %cst_75 = arith.constant 0.797884583 : f32
    %184 = vector.broadcast %cst_75 : f32 to vector<8x128xf32>
    %185 = arith.mulf %184, %183 : vector<8x128xf32>
    %186 = math.tanh %185 : vector<8x128xf32>
    %cst_76 = arith.constant 1.000000e+00 : f32
    %187 = vector.broadcast %cst_76 : f32 to vector<8x128xf32>
    %188 = arith.addf %187, %186 : vector<8x128xf32>
    %189 = arith.mulf %178, %188 : vector<8x128xf32>
    %190 = arith.truncf %189 : vector<8x128xf32> to vector<8x128xbf16>
    %c0_77 = arith.constant 0 : index
    %c0_78 = arith.constant 0 : index
    %191 = vector.load %arg20[%c0_77, %c0_78] : memref<128x32xbf16, #tpu.memory_space<vmem>>, vector<128x32xbf16>
    %cst_79 = arith.constant dense<0.000000e+00> : vector<8x32xf32>
    %192 = tpu.matmul %190, %191, %cst_79 {dimension_numbers = #tpu.dot_dimension_numbers<[1], [0], [0], [1], [0, 0, 1, 1], [], []>} : vector<8x128xbf16>, vector<128x32xbf16>, vector<8x32xf32> -> vector<8x32xf32>
    %193 = arith.addf %171, %192 : vector<8x32xf32>
    %c0_80 = arith.constant 0 : index
    %c0_81 = arith.constant 0 : index
    %194 = vector.load %arg21[%c0_80, %c0_81] : memref<1x32xf32, #tpu.memory_space<vmem>>, vector<1x32xf32>
    %195 = vector.broadcast %194 : vector<1x32xf32> to vector<8x32xf32>
    %196 = arith.addf %193, %195 : vector<8x32xf32>
    %197 = vector.broadcast %1 : f32 to vector<8x32xf32>
    %198 = arith.mulf %197, %196 : vector<8x32xf32>
    %199 = arith.addf %145, %198 : vector<8x32xf32>
    %c0_82 = arith.constant 0 : index
    %c0_83 = arith.constant 0 : index
    %c0_84 = arith.constant 0 : index
    %200 = vector.load %arg22[%c0_82, %c0_83, %c0_84] : memref<1x8x32xf32, #tpu.memory_space<vmem>>, vector<1x8x32xf32>
    %201 = vector.shape_cast %200 : vector<1x8x32xf32> to vector<8x32xf32>
    %202 = vector.shape_cast %199 : vector<8x32xf32> to vector<1x8x32xf32>
    tpu.vector_store %arg22[%c0_82, %c0_83, %c0_84], %202 {strides = array<i32>} : memref<1x8x32xf32, #tpu.memory_space<vmem>>, vector<1x8x32xf32>,
    return
  }
  func.func @transform_0(%arg0: i32, %arg1: i32) -> (i32, i32) {
    %c0_i32 = arith.constant 0 : i32
    %c0_i32_0 = arith.constant 0 : i32
    %c0_i32_1 = arith.constant 0 : i32
    return %c0_i32, %c0_i32_0 : i32, i32
  }
  func.func @transform_1(%arg0: i32, %arg1: i32) -> (i32, i32) {
    %c0_i32 = arith.constant 0 : i32
    %c0_i32_0 = arith.constant 0 : i32
    %c0_i32_1 = arith.constant 0 : i32
    return %c0_i32, %c0_i32_0 : i32, i32
  }
  func.func @transform_2(%arg0: i32, %arg1: i32) -> (i32, i32, i32) {
    %c0_i32 = arith.constant 0 : i32
    %c0_i32_0 = arith.constant 0 : i32
    return %arg0, %arg1, %c0_i32 : i32, i32, i32
  }
  func.func @transform_3(%arg0: i32, %arg1: i32) -> (i32, i32, i32) {
    %c0_i32 = arith.constant 0 : i32
    %c0_i32_0 = arith.constant 0 : i32
    %c0_i32_1 = arith.constant 0 : i32
    return %arg0, %c0_i32, %c0_i32_0 : i32, i32, i32
  }
  func.func @transform_4(%arg0: i32, %arg1: i32) -> (i32, i32) {
    %c0_i32 = arith.constant 0 : i32
    %c0_i32_0 = arith.constant 0 : i32
    %c0_i32_1 = arith.constant 0 : i32
    return %c0_i32, %c0_i32_0 : i32, i32
  }
  func.func @transform_5(%arg0: i32, %arg1: i32) -> (i32, i32) {
    %c0_i32 = arith.constant 0 : i32
    %c0_i32_0 = arith.constant 0 : i32
    %c0_i32_1 = arith.constant 0 : i32
    return %c0_i32, %c0_i32_0 : i32, i32
  }
  func.func @transform_6(%arg0: i32, %arg1: i32) -> (i32, i32) {
    %c0_i32 = arith.constant 0 : i32
    %c0_i32_0 = arith.constant 0 : i32
    %c0_i32_1 = arith.constant 0 : i32
    return %c0_i32, %c0_i32_0 : i32, i32
  }
  func.func @transform_7(%arg0: i32, %arg1: i32) -> (i32, i32) {
    %c0_i32 = arith.constant 0 : i32
    %c0_i32_0 = arith.constant 0 : i32
    %c0_i32_1 = arith.constant 0 : i32
    return %c0_i32, %c0_i32_0 : i32, i32
  }
  func.func @transform_8(%arg0: i32, %arg1: i32) -> (i32, i32) {
    %c0_i32 = arith.constant 0 : i32
    %c0_i32_0 = arith.constant 0 : i32
    %c0_i32_1 = arith.constant 0 : i32
    return %c0_i32, %c0_i32_0 : i32, i32
  }
  func.func @transform_9(%arg0: i32, %arg1: i32) -> (i32, i32) {
    %c0_i32 = arith.constant 0 : i32
    %c0_i32_0 = arith.constant 0 : i32
    %c0_i32_1 = arith.constant 0 : i32
    return %c0_i32, %c0_i32_0 : i32, i32
  }
  func.func @transform_10(%arg0: i32, %arg1: i32) -> (i32, i32) {
    %c0_i32 = arith.constant 0 : i32
    %c0_i32_0 = arith.constant 0 : i32
    %c0_i32_1 = arith.constant 0 : i32
    return %c0_i32, %c0_i32_0 : i32, i32
  }
  func.func @transform_11(%arg0: i32, %arg1: i32) -> (i32, i32) {
    %c0_i32 = arith.constant 0 : i32
    %c0_i32_0 = arith.constant 0 : i32
    %c0_i32_1 = arith.constant 0 : i32
    return %c0_i32, %c0_i32_0 : i32, i32
  }
  func.func @transform_12(%arg0: i32, %arg1: i32) -> (i32, i32) {
    %c0_i32 = arith.constant 0 : i32
    %c0_i32_0 = arith.constant 0 : i32
    %c0_i32_1 = arith.constant 0 : i32
    return %c0_i32, %c0_i32_0 : i32, i32
  }
  func.func @transform_13(%arg0: i32, %arg1: i32) -> (i32, i32) {
    %c0_i32 = arith.constant 0 : i32
    %c0_i32_0 = arith.constant 0 : i32
    %c0_i32_1 = arith.constant 0 : i32
    return %c0_i32, %c0_i32_0 : i32, i32
  }
  func.func @transform_14(%arg0: i32, %arg1: i32) -> (i32, i32) {
    %c0_i32 = arith.constant 0 : i32
    %c0_i32_0 = arith.constant 0 : i32
    %c0_i32_1 = arith.constant 0 : i32
    return %c0_i32, %c0_i32_0 : i32, i32
  }
  func.func @transform_15(%arg0: i32, %arg1: i32) -> (i32, i32) {
    %c0_i32 = arith.constant 0 : i32
    %c0_i32_0 = arith.constant 0 : i32
    %c0_i32_1 = arith.constant 0 : i32
    return %c0_i32, %c0_i32_0 : i32, i32
  }
  func.func @transform_16(%arg0: i32, %arg1: i32) -> (i32, i32) {
    %c0_i32 = arith.constant 0 : i32
    %c0_i32_0 = arith.constant 0 : i32
    %c0_i32_1 = arith.constant 0 : i32
    return %c0_i32, %c0_i32_0 : i32, i32
  }
  func.func @transform_17(%arg0: i32, %arg1: i32) -> (i32, i32) {
    %c0_i32 = arith.constant 0 : i32
    %c0_i32_0 = arith.constant 0 : i32
    %c0_i32_1 = arith.constant 0 : i32
    return %c0_i32, %c0_i32_0 : i32, i32
  }
  func.func @transform_18(%arg0: i32, %arg1: i32) -> (i32, i32) {
    %c0_i32 = arith.constant 0 : i32
    %c0_i32_0 = arith.constant 0 : i32
    %c0_i32_1 = arith.constant 0 : i32
    return %c0_i32, %c0_i32_0 : i32, i32
  }
  func.func @transform_19(%arg0: i32, %arg1: i32) -> (i32, i32) {
    %c0_i32 = arith.constant 0 : i32
    %c0_i32_0 = arith.constant 0 : i32
    %c0_i32_1 = arith.constant 0 : i32
    return %c0_i32, %c0_i32_0 : i32, i32
  }
  func.func @transform_20(%arg0: i32, %arg1: i32) -> (i32, i32, i32) {
    %c0_i32 = arith.constant 0 : i32
    %c0_i32_0 = arith.constant 0 : i32
    return %arg0, %arg1, %c0_i32 : i32, i32, i32
  }
}

</mosaic_0001>

<llo_original>
// kernel: tpu_custom_call.1
$region0: #{tpu_custom_call.1}
  #allocation0 [shape = 'u32[]', space=smem, size = 0x4, offset = 0x4, fixed_abs, tag = 'smem constant byte address 0x4 - core index']
  #allocation1 [shape = 'u32[144,128]{1,0:T(1,128)}', space=vmem, size = 0x12000, scoped, tag = 'internal scratch']
  #allocation2 [shape = 'f32[1,1]{1,0:T(1,128)S(6)}', space=smem, size = 0x200, scoped, tag = 'scoped memory for tpu_custom_call.1']
  #allocation3 [shape = 'f32[1,1]{1,0:T(1,128)S(6)}', space=smem, size = 0x200, scoped, tag = 'scoped memory for tpu_custom_call.1']
  %s0 = inlined_call_operand.<no memory space> [shape: f32[1,1], index: 0, kind: input, shape index: {}]
  %s1 = inlined_call_operand.<no memory space> [shape: f32[1,1], index: 1, kind: input, shape index: {}]
  %s2 = inlined_call_operand.vmem [shape: f32[2,8,32], index: 2, kind: input, shape index: {}]
  %s3 = inlined_call_operand.vmem [shape: f32[2,8,32], index: 3, kind: input, shape index: {}]
  %s4 = inlined_call_operand.vmem [shape: f32[1,32], index: 4, kind: input, shape index: {}]
  %s5 = inlined_call_operand.hbm [shape: f32[1,32], index: 5, kind: input, shape index: {}]
  %s6 = inlined_call_operand.vmem [shape: bf16[32,32], index: 6, kind: input, shape index: {}]
  %s7 = inlined_call_operand.vmem [shape: bf16[32,32], index: 7, kind: input, shape index: {}]
  %s8 = inlined_call_operand.vmem [shape: bf16[32,32], index: 8, kind: input, shape index: {}]
  %s9 = inlined_call_operand.hbm [shape: f32[1,32], index: 9, kind: input, shape index: {}]
  %s10 = inlined_call_operand.hbm [shape: f32[1,32], index: 10, kind: input, shape index: {}]
  %s11 = inlined_call_operand.hbm [shape: f32[1,32], index: 11, kind: input, shape index: {}]
  %s12 = inlined_call_operand.vmem [shape: bf16[32,32], index: 12, kind: input, shape index: {}]
  %s13 = inlined_call_operand.hbm [shape: f32[1,32], index: 13, kind: input, shape index: {}]
  %s14 = inlined_call_operand.vmem [shape: f32[1,32], index: 14, kind: input, shape index: {}]
  %s15 = inlined_call_operand.vmem [shape: f32[1,32], index: 15, kind: input, shape index: {}]
  %s16 = inlined_call_operand.vmem [shape: bf16[32,128], index: 16, kind: input, shape index: {}]
  %s17 = inlined_call_operand.vmem [shape: f32[1,128], index: 17, kind: input, shape index: {}]
  %s18 = inlined_call_operand.vmem [shape: bf16[128,32], index: 18, kind: input, shape index: {}]
  %s19 = inlined_call_operand.vmem [shape: f32[1,32], index: 19, kind: input, shape index: {}]
  %s20 = inlined_call_operand.hbm [shape: f32[2,8,32], index: 20, kind: output, shape index: {}]
  %s21 = sld [smem:[#allocation0]]
  $region133: #{tpu_custom_call.1} parent=0
    _
  %s23 = ssub.s32 1, %s21
  %s24 = scalar_select 0, %s23, %s21
  %25 = sst [smem:[#allocation2]] %s0
  %26 = sst [smem:[#allocation3]] %s1
  $region1: #{tpu_custom_call.1} parent=0
    #allocation4 [shape = 'u8[512]{0}', space=vmem, size = 0x400, scoped, tag = 'input window, operand 5, single buffered']
    #allocation5 [shape = 's32[2]{0}', space=sflag, size = 0x8, scoped, tag = 'scoped memory for tpu_custom_call.1']
    #allocation6 [shape = 's32[2]{0}', space=sflag, size = 0x8, scoped, tag = 'scoped memory for tpu_custom_call.1']
    #allocation7 [shape = 'u8[512]{0}', space=vmem, size = 0x400, scoped, tag = 'input window, operand 9, single buffered']
    #allocation8 [shape = 's32[1]{0}', space=sflag, size = 0x4, scoped, tag = 'scoped memory for tpu_custom_call.1']
    #allocation9 [shape = 'u8[512]{0}', space=vmem, size = 0x400, scoped, tag = 'input window, operand 10, single buffered']
    #allocation10 [shape = 'u8[512]{0}', space=vmem, size = 0x400, scoped, tag = 'input window, operand 11, single buffered']
    #allocation11 [shape = 's32[1]{0}', space=sflag, size = 0x4, scoped, tag = 'scoped memory for tpu_custom_call.1']
    #allocation12 [shape = 'u8[512]{0}', space=vmem, size = 0x400, scoped, tag = 'input window, operand 13, single buffered']
    #allocation13 [shape = 'u8[8192]{0}', space=vmem, size = 0x2000, scoped, tag = 'output window, operand 0']
    %27 = vsyncpa [#allocation5], 0
    %28 = vsyncpa [#allocation8], 0
    %29 = vsyncpa [#allocation11], 0
    %30 = vsyncpa [#allocation6], 0
    %s31 = scalar_lea.sflag [#allocation6], 1
    %32 = vsyncpa %s31, 0
    loop: start=0, step=1, limit=4
    $region2: #{tpu_custom_call.1} parent=1 // loop_pre_header
      _
    $region3: #{tpu_custom_call.1} parent=1 // loop_header
      %s34 = sphi 0, %s38
      %p35 = scmp.ge.s32.totalorder %s34, 4
      %s41 = sphi 0, %s53
      %s42 = sphi 0, %s49
      %s43 = sphi 0, %s41
      %s44 = sphi 0, %s42
      %s45 = sphi 0, %s43
      %s46 = sphi 0, %s44
      %s54 = sphi 0, %s54
      %s56 = sphi 0, %s54
      %s57 = sphi 0, %s56
      %s71 = sphi 0, %s57
      %s75 = sphi 0, %s75
      %s77 = sphi 0, %s75
      %s78 = sphi 0, %s77
      %s92 = sphi 0, %s78
      %s100 = sphi 0, %s102
      %s103 = sphi 0, %s100
      %s104 = sphi 0, %s103
      %s120 = sphi 0, %s104
      %s126 = sphi 0, %s128
      %s129 = sphi 0, %s126
      %s130 = sphi 0, %s129
      %s146 = sphi 0, %s130
      %s150 = sphi 0, %s150
      %s152 = sphi 0, %s150
      %s153 = sphi 0, %s152
      %s167 = sphi 0, %s153
      %s171 = sphi 0, %s171
      %s173 = sphi 0, %s171
      %s174 = sphi 0, %s173
      %s188 = sphi 0, %s174
      %s192 = sphi 0, %s192
      %s194 = sphi 0, %s192
      %s195 = sphi 0, %s194
      %s209 = sphi 0, %s195
      %s213 = sphi 0, %s213
      %s215 = sphi 0, %s213
      %s216 = sphi 0, %s215
      %s230 = sphi 0, %s216
      %s234 = sphi 0, %s234
      %s236 = sphi 0, %s234
      %s237 = sphi 0, %s236
      %s251 = sphi 0, %s237
      %s255 = sphi 0, %s255
      %s257 = sphi 0, %s255
      %s258 = sphi 0, %s257
      %s272 = sphi 0, %s258
      %s276 = sphi 0, %s276
      %s278 = sphi 0, %s276
      %s279 = sphi 0, %s278
      %s293 = sphi 0, %s279
      %s297 = sphi 0, %s297
      %s299 = sphi 0, %s297
      %s300 = sphi 0, %s299
      %s314 = sphi 0, %s300
      %s318 = sphi 0, %s318
      %s320 = sphi 0, %s318
      %s321 = sphi 0, %s320
      %s335 = sphi 0, %s321
      %s339 = sphi 0, %s339
      %s341 = sphi 0, %s339
      %s342 = sphi 0, %s341
      %s356 = sphi 0, %s342
      %s360 = sphi 0, %s360
      %s362 = sphi 0, %s360
      %s363 = sphi 0, %s362
      %s377 = sphi 0, %s363
      %s381 = sphi 0, %s381
      %s383 = sphi 0, %s381
      %s384 = sphi 0, %s383
      %s398 = sphi 0, %s384
      %s402 = sphi 0, %s402
      %s404 = sphi 0, %s402
      %s405 = sphi 0, %s404
      %s419 = sphi 0, %s405
      %s423 = sphi 0, %s423
      %s425 = sphi 0, %s423
      %s426 = sphi 0, %s425
      %s440 = sphi 0, %s426
      %s444 = sphi 0, %s444
      %s446 = sphi 0, %s444
      %s447 = sphi 0, %s446
      %s461 = sphi 0, %s447
      %s465 = sphi 0, %s465
      %s467 = sphi 0, %s465
      %s468 = sphi 0, %s467
      %s482 = sphi 0, %s468
      %s490 = sphi 0, %s492
      %s493 = sphi 0, %s490
      %s494 = sphi 0, %s493
      %s510 = sphi 0, %s494
    $region4: #{tpu_custom_call.1} parent=1 // loop_header_branch
      %37 = sbr.rel (%p35) target = $region8
    $region5: #{tpu_custom_call.1} parent=1 // loop_body
      %s39 = ssub.s32 %s34, 1
      %s40 = ssub.s32 %s34, 2
      %s47 = sadd.s32 1, %s42
      %p48 = scmp.ge.s32.totalorder %s47, 1
      %s49 = scalar_select %p48, 0, %s47
      %s50 = sadd.s32 1, %s41
      %s51 = scalar_select %p48, %s50, %s41
      %p52 = scmp.ge.s32.totalorder %s51, 2
      %s53 = scalar_select %p52, 0, %s51
      %s55 = sadd.s32 %s54, 1
      %p58 = scmp.eq.s32.totalorder %s34, 1
      %p59 = scmp.ne.s32.totalorder %s54, %s56
      %p60 = scmp.eq.s32.totalorder %s34, 0
      %p61 = por %p59, %p60
      %p62 = scmp.ne.s32.totalorder %s54, %s56
      %p63 = scmp.eq.s32.totalorder %s39, 1
      %p64 = por %p62, %p63
      %p65 = scmp.ne.s32.totalorder %s56, %s57
      %p66 = scmp.eq.s32.totalorder %s39, 0
      %p67 = por %p65, %p66
      %p68 = scmp.ne.s32.totalorder %s56, %s57
      %p69 = scmp.eq.s32.totalorder %s40, 1
      %p70 = por %p68, %p69
      %p72 = scmp.ne.s32.totalorder %s57, %s71
      %p73 = scmp.eq.s32.totalorder %s40, 0
      %p74 = por %p72, %p73
      %s76 = sadd.s32 %s75, 1
      %p79 = scmp.eq.s32.totalorder %s34, 1
      %p80 = scmp.ne.s32.totalorder %s75, %s77
      %p81 = scmp.eq.s32.totalorder %s34, 0
      %p82 = por %p80, %p81
      %p83 = scmp.ne.s32.totalorder %s75, %s77
      %p84 = scmp.eq.s32.totalorder %s39, 1
      %p85 = por %p83, %p84
      %p86 = scmp.ne.s32.totalorder %s77, %s78
      %p87 = scmp.eq.s32.totalorder %s39, 0
      %p88 = por %p86, %p87
      %p89 = scmp.ne.s32.totalorder %s77, %s78
      %p90 = scmp.eq.s32.totalorder %s40, 1
      %p91 = por %p89, %p90
      %p93 = scmp.ne.s32.totalorder %s78, %s92
      %p94 = scmp.eq.s32.totalorder %s40, 0
      %p95 = por %p93, %p94
      %s96 = ssub.s32 %s41, %s53
      %s97 = ssub.s32 %s42, %s49
      %s98 = sor.u32 %s96, %s97
      %p99 = scmp.eq.s32.totalorder %s98, 0
      %s101 = sadd.s32 %s100, 1
      %s102 = scalar_select %p99, %s100, %s101
      %p105 = pneg %p99
      %p106 = scmp.eq.s32.totalorder %s34, 1
      %p107 = por %p105, %p106
      %p108 = scmp.ne.s32.totalorder %s100, %s103
      %p109 = scmp.eq.s32.totalorder %s34, 0
      %p110 = por %p108, %p109
      %p111 = scmp.ne.s32.totalorder %s100, %s103
      %p112 = scmp.eq.s32.totalorder %s39, 1
      %p113 = por %p111, %p112
      %p114 = scmp.ne.s32.totalorder %s103, %s104
      %p115 = scmp.eq.s32.totalorder %s39, 0
      %p116 = por %p114, %p115
      %p117 = scmp.ne.s32.totalorder %s103, %s104
      %p118 = scmp.eq.s32.totalorder %s40, 1
      %p119 = por %p117, %p118
      %p121 = scmp.ne.s32.totalorder %s104, %s120
      %p122 = scmp.eq.s32.totalorder %s40, 0
      %p123 = por %p121, %p122
      %s124 = ssub.s32 %s41, %s53
      %p125 = scmp.eq.s32.totalorder %s124, 0
      %s127 = sadd.s32 %s126, 1
      %s128 = scalar_select %p125, %s126, %s127
      %p131 = pneg %p125
      %p132 = scmp.eq.s32.totalorder %s34, 1
      %p133 = por %p131, %p132
      %p134 = scmp.ne.s32.totalorder %s126, %s129
      %p135 = scmp.eq.s32.totalorder %s34, 0
      %p136 = por %p134, %p135
      %p137 = scmp.ne.s32.totalorder %s126, %s129
      %p138 = scmp.eq.s32.totalorder %s39, 1
      %p139 = por %p137, %p138
      %p140 = scmp.ne.s32.totalorder %s129, %s130
      %p141 = scmp.eq.s32.totalorder %s39, 0
      %p142 = por %p140, %p141
      %p143 = scmp.ne.s32.totalorder %s129, %s130
      %p144 = scmp.eq.s32.totalorder %s40, 1
      %p145 = por %p143, %p144
      %p147 = scmp.ne.s32.totalorder %s130, %s146
      %p148 = scmp.eq.s32.totalorder %s40, 0
      %p149 = por %p147, %p148
      %s151 = sadd.s32 %s150, 1
      %p154 = scmp.eq.s32.totalorder %s34, 1
      %p155 = scmp.ne.s32.totalorder %s150, %s152
      %p156 = scmp.eq.s32.totalorder %s34, 0
      %p157 = por %p155, %p156
      %p158 = scmp.ne.s32.totalorder %s150, %s152
      %p159 = scmp.eq.s32.totalorder %s39, 1
      %p160 = por %p158, %p159
      %p161 = scmp.ne.s32.totalorder %s152, %s153
      %p162 = scmp.eq.s32.totalorder %s39, 0
      %p163 = por %p161, %p162
      %p164 = scmp.ne.s32.totalorder %s152, %s153
      %p165 = scmp.eq.s32.totalorder %s40, 1
      %p166 = por %p164, %p165
      %p168 = scmp.ne.s32.totalorder %s153, %s167
      %p169 = scmp.eq.s32.totalorder %s40, 0
      %p170 = por %p168, %p169
      %s172 = sadd.s32 %s171, 1
      %p175 = scmp.eq.s32.totalorder %s34, 1
      %p176 = scmp.ne.s32.totalorder %s171, %s173
      %p177 = scmp.eq.s32.totalorder %s34, 0
      %p178 = por %p176, %p177
      %p179 = scmp.ne.s32.totalorder %s171, %s173
      %p180 = scmp.eq.s32.totalorder %s39, 1
      %p181 = por %p179, %p180
      %p182 = scmp.ne.s32.totalorder %s173, %s174
      %p183 = scmp.eq.s32.totalorder %s39, 0
      %p184 = por %p182, %p183
      %p185 = scmp.ne.s32.totalorder %s173, %s174
      %p186 = scmp.eq.s32.totalorder %s40, 1
      %p187 = por %p185, %p186
      %p189 = scmp.ne.s32.totalorder %s174, %s188
      %p190 = scmp.eq.s32.totalorder %s40, 0
      %p191 = por %p189, %p190
      %s193 = sadd.s32 %s192, 1
      %p196 = scmp.eq.s32.totalorder %s34, 1
      %p197 = scmp.ne.s32.totalorder %s192, %s194
      %p198 = scmp.eq.s32.totalorder %s34, 0
      %p199 = por %p197, %p198
      %p200 = scmp.ne.s32.totalorder %s192, %s194
      %p201 = scmp.eq.s32.totalorder %s39, 1
      %p202 = por %p200, %p201
      %p203 = scmp.ne.s32.totalorder %s194, %s195
      %p204 = scmp.eq.s32.totalorder %s39, 0
      %p205 = por %p203, %p204
      %p206 = scmp.ne.s32.totalorder %s194, %s195
      %p207 = scmp.eq.s32.totalorder %s40, 1
      %p208 = por %p206, %p207
      %p210 = scmp.ne.s32.totalorder %s195, %s209
      %p211 = scmp.eq.s32.totalorder %s40, 0
      %p212 = por %p210, %p211
      %s214 = sadd.s32 %s213, 1
      %p217 = scmp.eq.s32.totalorder %s34, 1
      %p218 = scmp.ne.s32.totalorder %s213, %s215
      %p219 = scmp.eq.s32.totalorder %s34, 0
      %p220 = por %p218, %p219
      %p221 = scmp.ne.s32.totalorder %s213, %s215
      %p222 = scmp.eq.s32.totalorder %s39, 1
      %p223 = por %p221, %p222
      %p224 = scmp.ne.s32.totalorder %s215, %s216
      %p225 = scmp.eq.s32.totalorder %s39, 0
      %p226 = por %p224, %p225
      %p227 = scmp.ne.s32.totalorder %s215, %s216
      %p228 = scmp.eq.s32.totalorder %s40, 1
      %p229 = por %p227, %p228
      %p231 = scmp.ne.s32.totalorder %s216, %s230
      %p232 = scmp.eq.s32.totalorder %s40, 0
      %p233 = por %p231, %p232
      %s235 = sadd.s32 %s234, 1
      %p238 = scmp.eq.s32.totalorder %s34, 1
      %p239 = scmp.ne.s32.totalorder %s234, %s236
      %p240 = scmp.eq.s32.totalorder %s34, 0
      %p241 = por %p239, %p240
      %p242 = scmp.ne.s32.totalorder %s234, %s236
      %p243 = scmp.eq.s32.totalorder %s39, 1
      %p244 = por %p242, %p243
      %p245 = scmp.ne.s32.totalorder %s236, %s237
      %p246 = scmp.eq.s32.totalorder %s39, 0
      %p247 = por %p245, %p246
      %p248 = scmp.ne.s32.totalorder %s236, %s237
      %p249 = scmp.eq.s32.totalorder %s40, 1
      %p250 = por %p248, %p249
      %p252 = scmp.ne.s32.totalorder %s237, %s251
      %p253 = scmp.eq.s32.totalorder %s40, 0
      %p254 = por %p252, %p253
      %s256 = sadd.s32 %s255, 1
      %p259 = scmp.eq.s32.totalorder %s34, 1
      %p260 = scmp.ne.s32.totalorder %s255, %s257
      %p261 = scmp.eq.s32.totalorder %s34, 0
      %p262 = por %p260, %p261
      %p263 = scmp.ne.s32.totalorder %s255, %s257
      %p264 = scmp.eq.s32.totalorder %s39, 1
      %p265 = por %p263, %p264
      %p266 = scmp.ne.s32.totalorder %s257, %s258
      %p267 = scmp.eq.s32.totalorder %s39, 0
      %p268 = por %p266, %p267
      %p269 = scmp.ne.s32.totalorder %s257, %s258
      %p270 = scmp.eq.s32.totalorder %s40, 1
      %p271 = por %p269, %p270
      %p273 = scmp.ne.s32.totalorder %s258, %s272
      %p274 = scmp.eq.s32.totalorder %s40, 0
      %p275 = por %p273, %p274
      %s277 = sadd.s32 %s276, 1
      %p280 = scmp.eq.s32.totalorder %s34, 1
      %p281 = scmp.ne.s32.totalorder %s276, %s278
      %p282 = scmp.eq.s32.totalorder %s34, 0
      %p283 = por %p281, %p282
      %p284 = scmp.ne.s32.totalorder %s276, %s278
      %p285 = scmp.eq.s32.totalorder %s39, 1
      %p286 = por %p284, %p285
      %p287 = scmp.ne.s32.totalorder %s278, %s279
      %p288 = scmp.eq.s32.totalorder %s39, 0
      %p289 = por %p287, %p288
      %p290 = scmp.ne.s32.totalorder %s278, %s279
      %p291 = scmp.eq.s32.totalorder %s40, 1
      %p292 = por %p290, %p291
      %p294 = scmp.ne.s32.totalorder %s279, %s293
      %p295 = scmp.eq.s32.totalorder %s40, 0
      %p296 = por %p294, %p295
      %s298 = sadd.s32 %s297, 1
      %p301 = scmp.eq.s32.totalorder %s34, 1
      %p302 = scmp.ne.s32.totalorder %s297, %s299
      %p303 = scmp.eq.s32.totalorder %s34, 0
      %p304 = por %p302, %p303
      %p305 = scmp.ne.s32.totalorder %s297, %s299
      %p306 = scmp.eq.s32.totalorder %s39, 1
      %p307 = por %p305, %p306
      %p308 = scmp.ne.s32.totalorder %s299, %s300
      %p309 = scmp.eq.s32.totalorder %s39, 0
      %p310 = por %p308, %p309
      %p311 = scmp.ne.s32.totalorder %s299, %s300
      %p312 = scmp.eq.s32.totalorder %s40, 1
      %p313 = por %p311, %p312
      %p315 = scmp.ne.s32.totalorder %s300, %s314
      %p316 = scmp.eq.s32.totalorder %s40, 0
      %p317 = por %p315, %p316
      %s319 = sadd.s32 %s318, 1
      %p322 = scmp.eq.s32.totalorder %s34, 1
      %p323 = scmp.ne.s32.totalorder %s318, %s320
      %p324 = scmp.eq.s32.totalorder %s34, 0
      %p325 = por %p323, %p324
      %p326 = scmp.ne.s32.totalorder %s318, %s320
      %p327 = scmp.eq.s32.totalorder %s39, 1
      %p328 = por %p326, %p327
      %p329 = scmp.ne.s32.totalorder %s320, %s321
      %p330 = scmp.eq.s32.totalorder %s39, 0
      %p331 = por %p329, %p330
      %p332 = scmp.ne.s32.totalorder %s320, %s321
      %p333 = scmp.eq.s32.totalorder %s40, 1
      %p334 = por %p332, %p333
      %p336 = scmp.ne.s32.totalorder %s321, %s335
      %p337 = scmp.eq.s32.totalorder %s40, 0
      %p338 = por %p336, %p337
      %s340 = sadd.s32 %s339, 1
      %p343 = scmp.eq.s32.totalorder %s34, 1
      %p344 = scmp.ne.s32.totalorder %s339, %s341
      %p345 = scmp.eq.s32.totalorder %s34, 0
      %p346 = por %p344, %p345
      %p347 = scmp.ne.s32.totalorder %s339, %s341
      %p348 = scmp.eq.s32.totalorder %s39, 1
      %p349 = por %p347, %p348
      %p350 = scmp.ne.s32.totalorder %s341, %s342
      %p351 = scmp.eq.s32.totalorder %s39, 0
      %p352 = por %p350, %p351
      %p353 = scmp.ne.s32.totalorder %s341, %s342
      %p354 = scmp.eq.s32.totalorder %s40, 1
      %p355 = por %p353, %p354
      %p357 = scmp.ne.s32.totalorder %s342, %s356
      %p358 = scmp.eq.s32.totalorder %s40, 0
      %p359 = por %p357, %p358
      %s361 = sadd.s32 %s360, 1
      %p364 = scmp.eq.s32.totalorder %s34, 1
      %p365 = scmp.ne.s32.totalorder %s360, %s362
      %p366 = scmp.eq.s32.totalorder %s34, 0
      %p367 = por %p365, %p366
      %p368 = scmp.ne.s32.totalorder %s360, %s362
      %p369 = scmp.eq.s32.totalorder %s39, 1
      %p370 = por %p368, %p369
      %p371 = scmp.ne.s32.totalorder %s362, %s363
      %p372 = scmp.eq.s32.totalorder %s39, 0
      %p373 = por %p371, %p372
      %p374 = scmp.ne.s32.totalorder %s362, %s363
      %p375 = scmp.eq.s32.totalorder %s40, 1
      %p376 = por %p374, %p375
      %p378 = scmp.ne.s32.totalorder %s363, %s377
      %p379 = scmp.eq.s32.totalorder %s40, 0
      %p380 = por %p378, %p379
      %s382 = sadd.s32 %s381, 1
      %p385 = scmp.eq.s32.totalorder %s34, 1
      %p386 = scmp.ne.s32.totalorder %s381, %s383
      %p387 = scmp.eq.s32.totalorder %s34, 0
      %p388 = por %p386, %p387
      %p389 = scmp.ne.s32.totalorder %s381, %s383
      %p390 = scmp.eq.s32.totalorder %s39, 1
      %p391 = por %p389, %p390
      %p392 = scmp.ne.s32.totalorder %s383, %s384
      %p393 = scmp.eq.s32.totalorder %s39, 0
      %p394 = por %p392, %p393
      %p395 = scmp.ne.s32.totalorder %s383, %s384
      %p396 = scmp.eq.s32.totalorder %s40, 1
      %p397 = por %p395, %p396
      %p399 = scmp.ne.s32.totalorder %s384, %s398
      %p400 = scmp.eq.s32.totalorder %s40, 0
      %p401 = por %p399, %p400
      %s403 = sadd.s32 %s402, 1
      %p406 = scmp.eq.s32.totalorder %s34, 1
      %p407 = scmp.ne.s32.totalorder %s402, %s404
      %p408 = scmp.eq.s32.totalorder %s34, 0
      %p409 = por %p407, %p408
      %p410 = scmp.ne.s32.totalorder %s402, %s404
      %p411 = scmp.eq.s32.totalorder %s39, 1
      %p412 = por %p410, %p411
      %p413 = scmp.ne.s32.totalorder %s404, %s405
      %p414 = scmp.eq.s32.totalorder %s39, 0
      %p415 = por %p413, %p414
      %p416 = scmp.ne.s32.totalorder %s404, %s405
      %p417 = scmp.eq.s32.totalorder %s40, 1
      %p418 = por %p416, %p417
      %p420 = scmp.ne.s32.totalorder %s405, %s419
      %p421 = scmp.eq.s32.totalorder %s40, 0
      %p422 = por %p420, %p421
      %s424 = sadd.s32 %s423, 1
      %p427 = scmp.eq.s32.totalorder %s34, 1
      %p428 = scmp.ne.s32.totalorder %s423, %s425
      %p429 = scmp.eq.s32.totalorder %s34, 0
      %p430 = por %p428, %p429
      %p431 = scmp.ne.s32.totalorder %s423, %s425
      %p432 = scmp.eq.s32.totalorder %s39, 1
      %p433 = por %p431, %p432
      %p434 = scmp.ne.s32.totalorder %s425, %s426
      %p435 = scmp.eq.s32.totalorder %s39, 0
      %p436 = por %p434, %p435
      %p437 = scmp.ne.s32.totalorder %s425, %s426
      %p438 = scmp.eq.s32.totalorder %s40, 1
      %p439 = por %p437, %p438
      %p441 = scmp.ne.s32.totalorder %s426, %s440
      %p442 = scmp.eq.s32.totalorder %s40, 0
      %p443 = por %p441, %p442
      %s445 = sadd.s32 %s444, 1
      %p448 = scmp.eq.s32.totalorder %s34, 1
      %p449 = scmp.ne.s32.totalorder %s444, %s446
      %p450 = scmp.eq.s32.totalorder %s34, 0
      %p451 = por %p449, %p450
      %p452 = scmp.ne.s32.totalorder %s444, %s446
      %p453 = scmp.eq.s32.totalorder %s39, 1
      %p454 = por %p452, %p453
      %p455 = scmp.ne.s32.totalorder %s446, %s447
      %p456 = scmp.eq.s32.totalorder %s39, 0
      %p457 = por %p455, %p456
      %p458 = scmp.ne.s32.totalorder %s446, %s447
      %p459 = scmp.eq.s32.totalorder %s40, 1
      %p460 = por %p458, %p459
      %p462 = scmp.ne.s32.totalorder %s447, %s461
      %p463 = scmp.eq.s32.totalorder %s40, 0
      %p464 = por %p462, %p463
      %s466 = sadd.s32 %s465, 1
      %p469 = scmp.eq.s32.totalorder %s34, 1
      %p470 = scmp.ne.s32.totalorder %s465, %s467
      %p471 = scmp.eq.s32.totalorder %s34, 0
      %p472 = por %p470, %p471
      %p473 = scmp.ne.s32.totalorder %s465, %s467
      %p474 = scmp.eq.s32.totalorder %s39, 1
      %p475 = por %p473, %p474
      %p476 = scmp.ne.s32.totalorder %s467, %s468
      %p477 = scmp.eq.s32.totalorder %s39, 0
      %p478 = por %p476, %p477
      %p479 = scmp.ne.s32.totalorder %s467, %s468
      %p480 = scmp.eq.s32.totalorder %s40, 1
      %p481 = por %p479, %p480
      %p483 = scmp.ne.s32.totalorder %s468, %s482
      %p484 = scmp.eq.s32.totalorder %s40, 0
      %p485 = por %p483, %p484
      %s486 = ssub.s32 %s41, %s53
      %s487 = ssub.s32 %s42, %s49
      %s488 = sor.u32 %s486, %s487
      %p489 = scmp.eq.s32.totalorder %s488, 0
      %s491 = sadd.s32 %s490, 1
      %s492 = scalar_select %p489, %s490, %s491
      %p495 = pneg %p489
      %p496 = scmp.eq.s32.totalorder %s34, 1
      %p497 = por %p495, %p496
      %p498 = scmp.ne.s32.totalorder %s490, %s493
      %p499 = scmp.eq.s32.totalorder %s34, 0
      %p500 = por %p498, %p499
      %p501 = scmp.ne.s32.totalorder %s490, %s493
      %p502 = scmp.eq.s32.totalorder %s39, 1
      %p503 = por %p501, %p502
      %p504 = scmp.ne.s32.totalorder %s493, %s494
      %p505 = scmp.eq.s32.totalorder %s39, 0
      %p506 = por %p504, %p505
      %p507 = scmp.ne.s32.totalorder %s493, %s494
      %p508 = scmp.eq.s32.totalorder %s40, 1
      %p509 = por %p507, %p508
      %p511 = scmp.ne.s32.totalorder %s494, %s510
      %p512 = scmp.eq.s32.totalorder %s40, 0
      %p513 = por %p511, %p512
      %p514 = scmp.le.s32.totalorder 1, %s34
      %p515 = scmp.lt.s32.totalorder %s34, 3
      %p516 = pnand %p514, %p515
      %p517 = pneg %p516
      // Predicated region
      $region9: #{tpu_custom_call.1} parent=5 // pred_check
        _
      $region10: #{tpu_custom_call.1} parent=5 // pred_check_branch
        %519 = sbr.rel (%p516) target = $region12
      $region11: #{tpu_custom_call.1} parent=5 // pred_region
        %s520 = ssub.s32 %s34, 1
        // Predicated region
        $region13: #{tpu_custom_call.1} parent=11 // pred_check
          %p521 = pneg %p67
        $region14: #{tpu_custom_call.1} parent=11 // pred_check_branch
          %523 = sbr.rel (%p521) target = $region16
        $region15: #{tpu_custom_call.1} parent=11 // pred_region
          _
        $region16: #{tpu_custom_call.1} parent=11 // pred_fallthru
          _
        // Predicated region
        $region17: #{tpu_custom_call.1} parent=11 // pred_check
          %p524 = pneg %p88
        $region18: #{tpu_custom_call.1} parent=11 // pred_check_branch
          %526 = sbr.rel (%p524) target = $region20
        $region19: #{tpu_custom_call.1} parent=11 // pred_region
          _
        $region20: #{tpu_custom_call.1} parent=11 // pred_fallthru
          _
        // Predicated region
        $region21: #{tpu_custom_call.1} parent=11 // pred_check
          %p527 = pneg %p163
        $region22: #{tpu_custom_call.1} parent=11 // pred_check_branch
          %529 = sbr.rel (%p527) target = $region24
        $region23: #{tpu_custom_call.1} parent=11 // pred_region
          _
        $region24: #{tpu_custom_call.1} parent=11 // pred_fallthru
          _
        // Predicated region
        $region25: #{tpu_custom_call.1} parent=11 // pred_check
          %p530 = pneg %p184
        $region26: #{tpu_custom_call.1} parent=11 // pred_check_branch
          %532 = sbr.rel (%p530) target = $region28
        $region27: #{tpu_custom_call.1} parent=11 // pred_region
          %s534 = ssub.s32 16, 16
          %535 = vsyncadd [#allocation5], %s534
          %s537 = sshll.u32 [#allocation4], 4
          %s538 = int_to_ptr.vmem [resolvable:$true] %s537
          %540 = dma.hbm_to_vmem [thread:$0]  %s5, 16, %s538, [#allocation5]
        $region28: #{tpu_custom_call.1} parent=11 // pred_fallthru
          _
        // Predicated region
        $region29: #{tpu_custom_call.1} parent=11 // pred_check
          %p541 = pneg %p205
        $region30: #{tpu_custom_call.1} parent=11 // pred_check_branch
          %543 = sbr.rel (%p541) target = $region32
        $region31: #{tpu_custom_call.1} parent=11 // pred_region
          _
        $region32: #{tpu_custom_call.1} parent=11 // pred_fallthru
          _
        // Predicated region
        $region33: #{tpu_custom_call.1} parent=11 // pred_check
          %p544 = pneg %p226
        $region34: #{tpu_custom_call.1} parent=11 // pred_check_branch
          %546 = sbr.rel (%p544) target = $region36
        $region35: #{tpu_custom_call.1} parent=11 // pred_region
          _
        $region36: #{tpu_custom_call.1} parent=11 // pred_fallthru
          _
        // Predicated region
        $region37: #{tpu_custom_call.1} parent=11 // pred_check
          %p547 = pneg %p247
        $region38: #{tpu_custom_call.1} parent=11 // pred_check_branch
          %549 = sbr.rel (%p547) target = $region40
        $region39: #{tpu_custom_call.1} parent=11 // pred_region
          _
        $region40: #{tpu_custom_call.1} parent=11 // pred_fallthru
          _
        // Predicated region
        $region41: #{tpu_custom_call.1} parent=11 // pred_check
          %p550 = pneg %p268
        $region42: #{tpu_custom_call.1} parent=11 // pred_check_branch
          %552 = sbr.rel (%p550) target = $region44
        $region43: #{tpu_custom_call.1} parent=11 // pred_region
          %s554 = ssub.s32 16, 16
          %555 = vsyncadd [#allocation8], %s554
          %s557 = sshll.u32 [#allocation7], 4
          %s558 = int_to_ptr.vmem [resolvable:$true] %s557
          %560 = dma.hbm_to_vmem [thread:$0]  %s9, 16, %s558, [#allocation8]
        $region44: #{tpu_custom_call.1} parent=11 // pred_fallthru
          _
        // Predicated region
        $region45: #{tpu_custom_call.1} parent=11 // pred_check
          %p561 = pneg %p289
        $region46: #{tpu_custom_call.1} parent=11 // pred_check_branch
          %563 = sbr.rel (%p561) target = $region48
        $region47: #{tpu_custom_call.1} parent=11 // pred_region
          %s565 = ssub.s32 16, 16
          %566 = vsyncadd [#allocation8], %s565
          %s568 = sshll.u32 [#allocation9], 4
          %s569 = int_to_ptr.vmem [resolvable:$true] %s568
          %571 = dma.hbm_to_vmem [thread:$0]  %s10, 16, %s569, [#allocation8]
        $region48: #{tpu_custom_call.1} parent=11 // pred_fallthru
          _
        // Predicated region
        $region49: #{tpu_custom_call.1} parent=11 // pred_check
          %p572 = pneg %p310
        $region50: #{tpu_custom_call.1} parent=11 // pred_check_branch
          %574 = sbr.rel (%p572) target = $region52
        $region51: #{tpu_custom_call.1} parent=11 // pred_region
          %s576 = ssub.s32 16, 16
          %577 = vsyncadd [#allocation11], %s576
          %s579 = sshll.u32 [#allocation10], 4
          %s580 = int_to_ptr.vmem [resolvable:$true] %s579
          %582 = dma.hbm_to_vmem [thread:$0]  %s11, 16, %s580, [#allocation11]
        $region52: #{tpu_custom_call.1} parent=11 // pred_fallthru
          _
        // Predicated region
        $region53: #{tpu_custom_call.1} parent=11 // pred_check
          %p583 = pneg %p331
        $region54: #{tpu_custom_call.1} parent=11 // pred_check_branch
          %585 = sbr.rel (%p583) target = $region56
        $region55: #{tpu_custom_call.1} parent=11 // pred_region
          _
        $region56: #{tpu_custom_call.1} parent=11 // pred_fallthru
          _
        // Predicated region
        $region57: #{tpu_custom_call.1} parent=11 // pred_check
          %p586 = pneg %p352
        $region58: #{tpu_custom_call.1} parent=11 // pred_check_branch
          %588 = sbr.rel (%p586) target = $region60
        $region59: #{tpu_custom_call.1} parent=11 // pred_region
          %s590 = ssub.s32 16, 16
          %591 = vsyncadd [#allocation11], %s590
          %s593 = sshll.u32 [#allocation12], 4
          %s594 = int_to_ptr.vmem [resolvable:$true] %s593
          %596 = dma.hbm_to_vmem [thread:$0]  %s13, 16, %s594, [#allocation11]
        $region60: #{tpu_custom_call.1} parent=11 // pred_fallthru
          _
        // Predicated region
        $region61: #{tpu_custom_call.1} parent=11 // pred_check
          %p597 = pneg %p373
        $region62: #{tpu_custom_call.1} parent=11 // pred_check_branch
          %599 = sbr.rel (%p597) target = $region64
        $region63: #{tpu_custom_call.1} parent=11 // pred_region
          _
        $region64: #{tpu_custom_call.1} parent=11 // pred_fallthru
          _
        // Predicated region
        $region65: #{tpu_custom_call.1} parent=11 // pred_check
          %p600 = pneg %p394
        $region66: #{tpu_custom_call.1} parent=11 // pred_check_branch
          %602 = sbr.rel (%p600) target = $region68
        $region67: #{tpu_custom_call.1} parent=11 // pred_region
          _
        $region68: #{tpu_custom_call.1} parent=11 // pred_fallthru
          _
        // Predicated region
        $region69: #{tpu_custom_call.1} parent=11 // pred_check
          %p603 = pneg %p415
        $region70: #{tpu_custom_call.1} parent=11 // pred_check_branch
          %605 = sbr.rel (%p603) target = $region72
        $region71: #{tpu_custom_call.1} parent=11 // pred_region
          _
        $region72: #{tpu_custom_call.1} parent=11 // pred_fallthru
          _
        // Predicated region
        $region73: #{tpu_custom_call.1} parent=11 // pred_check
          %p606 = pneg %p436
        $region74: #{tpu_custom_call.1} parent=11 // pred_check_branch
          %608 = sbr.rel (%p606) target = $region76
        $region75: #{tpu_custom_call.1} parent=11 // pred_region
          _
        $region76: #{tpu_custom_call.1} parent=11 // pred_fallthru
          _
        // Predicated region
        $region77: #{tpu_custom_call.1} parent=11 // pred_check
          %p609 = pneg %p457
        $region78: #{tpu_custom_call.1} parent=11 // pred_check_branch
          %611 = sbr.rel (%p609) target = $region80
        $region79: #{tpu_custom_call.1} parent=11 // pred_region
          _
        $region80: #{tpu_custom_call.1} parent=11 // pred_fallthru
          _
        // Predicated region
        $region81: #{tpu_custom_call.1} parent=11 // pred_check
          %p612 = pneg %p478
        $region82: #{tpu_custom_call.1} parent=11 // pred_check_branch
          %614 = sbr.rel (%p612) target = $region84
        $region83: #{tpu_custom_call.1} parent=11 // pred_region
          _
        $region84: #{tpu_custom_call.1} parent=11 // pred_fallthru
          _
      $region12: #{tpu_custom_call.1} parent=5 // pred_fallthru
        _
      %p615 = scmp.lt.s32.totalorder %s34, 2
      // Predicated region
      $region85: #{tpu_custom_call.1} parent=5 // pred_check
        %p616 = pneg %p615
      $region86: #{tpu_custom_call.1} parent=5 // pred_check_branch
        %618 = sbr.rel (%p616) target = $region88
      $region87: #{tpu_custom_call.1} parent=5 // pred_region
        // Predicated region
        $region89: #{tpu_custom_call.1} parent=87 // pred_check
          %p619 = pneg %p110
        $region90: #{tpu_custom_call.1} parent=87 // pred_check_branch
          %621 = sbr.rel (%p619) target = $region92
        $region91: #{tpu_custom_call.1} parent=87 // pred_region
          %p622 = scmp.lt.s32.totalorder %s41, 1
          %s623 = scalar_select %p622, %s41, 1
          %p624 = scmp.lt.s32.totalorder %s42, 0
          %s625 = scalar_select %p624, %s42, 0
          %s626 = sadd.s32 %s625, %s623
          %s627 = smul.addr %s626, 8
          %s628 = scalar_lea.vmem %s2, %s627
        $region92: #{tpu_custom_call.1} parent=87 // pred_fallthru
          _
        // Predicated region
        $region93: #{tpu_custom_call.1} parent=87 // pred_check
          %p629 = pneg %p136
        $region94: #{tpu_custom_call.1} parent=87 // pred_check_branch
          %631 = sbr.rel (%p629) target = $region96
        $region95: #{tpu_custom_call.1} parent=87 // pred_region
          %p632 = scmp.lt.s32.totalorder %s41, 1
          %s633 = scalar_select %p632, %s41, 1
          %s634 = smul.addr %s633, 8
          %s635 = scalar_lea.vmem %s3, %s634
        $region96: #{tpu_custom_call.1} parent=87 // pred_fallthru
          _
      $region88: #{tpu_custom_call.1} parent=5 // pred_fallthru
        _
      %p636 = scmp.le.s32.totalorder 1, %s34
      %p637 = scmp.lt.s32.totalorder %s34, 3
      %p638 = pnand %p636, %p637
      %p639 = pneg %p638
      // Predicated region
      $region97: #{tpu_custom_call.1} parent=5 // pred_check
        _
      $region98: #{tpu_custom_call.1} parent=5 // pred_check_branch
        %641 = sbr.rel (%p638) target = $region100
      $region99: #{tpu_custom_call.1} parent=5 // pred_region
        %s642 = ssub.s32 %s34, 1
        // Predicated region
        $region101: #{tpu_custom_call.1} parent=99 // pred_check
          %p643 = pneg %p184
        $region102: #{tpu_custom_call.1} parent=99 // pred_check_branch
          %645 = sbr.rel (%p643) target = $region104
        $region103: #{tpu_custom_call.1} parent=99 // pred_region
          %646 = dma.done [#allocation5], 16
        $region104: #{tpu_custom_call.1} parent=99 // pred_fallthru
          _
        // Predicated region
        $region105: #{tpu_custom_call.1} parent=99 // pred_check
          %p647 = pneg %p268
        $region106: #{tpu_custom_call.1} parent=99 // pred_check_branch
          %649 = sbr.rel (%p647) target = $region108
        $region107: #{tpu_custom_call.1} parent=99 // pred_region
          %650 = dma.done [#allocation8], 16
        $region108: #{tpu_custom_call.1} parent=99 // pred_fallthru
          _
        // Predicated region
        $region109: #{tpu_custom_call.1} parent=99 // pred_check
          %p651 = pneg %p289
        $region110: #{tpu_custom_call.1} parent=99 // pred_check_branch
          %653 = sbr.rel (%p651) target = $region112
        $region111: #{tpu_custom_call.1} parent=99 // pred_region
          %654 = dma.done [#allocation8], 16
        $region112: #{tpu_custom_call.1} parent=99 // pred_fallthru
          _
        // Predicated region
        $region113: #{tpu_custom_call.1} parent=99 // pred_check
          %p655 = pneg %p310
        $region114: #{tpu_custom_call.1} parent=99 // pred_check_branch
          %657 = sbr.rel (%p655) target = $region116
        $region115: #{tpu_custom_call.1} parent=99 // pred_region
          %658 = dma.done [#allocation11], 16
        $region116: #{tpu_custom_call.1} parent=99 // pred_fallthru
          _
        // Predicated region
        $region117: #{tpu_custom_call.1} parent=99 // pred_check
          %p659 = pneg %p352
        $region118: #{tpu_custom_call.1} parent=99 // pred_check_branch
          %661 = sbr.rel (%p659) target = $region120
        $region119: #{tpu_custom_call.1} parent=99 // pred_region
          %662 = dma.done [#allocation11], 16
        $region120: #{tpu_custom_call.1} parent=99 // pred_fallthru
          _
        %p663 = pneg %p67
        %p664 = pneg %p64
        %p665 = pneg %p88
        %p666 = pneg %p85
        %p667 = scmp.lt.s32.totalorder %s43, 1
        %s668 = scalar_select %p667, %s43, 1
        %p669 = scmp.lt.s32.totalorder %s44, 0
        %s670 = scalar_select %p669, %s44, 0
        %s671 = sadd.s32 %s670, %s668
        %s672 = smul.addr %s671, 8
        %s673 = scalar_lea.vmem %s2, %s672
        %p674 = pneg %p116
        %p675 = pneg %p113
        %p676 = scmp.lt.s32.totalorder %s43, 1
        %s677 = scalar_select %p676, %s43, 1
        %s678 = smul.addr %s677, 8
        %s679 = scalar_lea.vmem %s3, %s678
        %p680 = pneg %p142
        %p681 = pneg %p139
        %p682 = pneg %p163
        %p683 = pneg %p160
        %p684 = pneg %p184
        %p685 = pneg %p181
        %p686 = pneg %p205
        %p687 = pneg %p202
        %p688 = pneg %p226
        %p689 = pneg %p223
        %p690 = pneg %p247
        %p691 = pneg %p244
        %p692 = pneg %p268
        %p693 = pneg %p265
        %p694 = pneg %p289
        %p695 = pneg %p286
        %p696 = pneg %p310
        %p697 = pneg %p307
        %p698 = pneg %p331
        %p699 = pneg %p328
        %p700 = pneg %p352
        %p701 = pneg %p349
        %p702 = pneg %p373
        %p703 = pneg %p370
        %p704 = pneg %p394
        %p705 = pneg %p391
        %p706 = pneg %p415
        %p707 = pneg %p412
        %p708 = pneg %p436
        %p709 = pneg %p433
        %p710 = pneg %p457
        %p711 = pneg %p454
        %p712 = pneg %p478
        %p713 = pneg %p475
        %p714 = pneg %p506
        %p715 = pneg %p503
        %s716 = sand.u32 %s493, 1
        %s717 = scalar_lea.sflag [#allocation6], %s716
        %s718 = sand.u32 %s493, 1
        %s719 = smul.addr %s718, 8
        %s720 = scalar_lea.vmem [#allocation13], %s719
        %p721 = scmp.lt.s32.totalorder %s43, 1
        %s722 = scalar_select %p721, %s43, 1
        %p723 = scmp.lt.s32.totalorder %s44, 0
        %s724 = scalar_select %p723, %s44, 0
        %s725 = sadd.s32 %s724, %s722
        %s726 = smul.addr %s725, 8
        %s727 = scalar_lea.vmem %s2, %s726
        %p728 = scmp.lt.s32.totalorder %s43, 1
        %s729 = scalar_select %p728, %s43, 1
        %s730 = smul.addr %s729, 8
        %s731 = scalar_lea.vmem %s3, %s730
        %s733 = sld [smem:[#allocation2]]
        %s734 = sld [smem:[#allocation3]]
        %v735 = vld [vmem:[%s727] sm:$0xff]
        %v736 = vld [vmem:[%s731] sm:$0xff]
        %v737 = vld [vmem:[%s4] sm:$0x1]
        %v738 = vld [vmem:[#allocation4] sm:$0x1]
        %vm739 = vcmask 261120
        %v740 = vsel %vm739, %v735, 0.0
        %741 = vadd.xlane.f32.xlu0 %v740
        %v742 = vpop.xlane.xlu0 %741
        %v743 = vrcp.pop 32.0
        %v744 = vmul.f32 %v742, %v743
        %v745 = vsub.f32 %v735, %v744
        %v746 = vmul.f32 %v745, %v745
        %v747 = vsel %vm739, %v746, 0.0
        %748 = vadd.xlane.f32.xlu0 %v747
        %v749 = vpop.xlane.xlu0 %748
        %v750 = vmul.f32 %v749, %v743
        %v751 = vadd.f32 %v750, 1e-05
        %v752 = vrsqrt.pop %v751
        %v753 = vmul.f32 %v745, %v752
        %v755 = vlaneseq
        %v756 = vshrl.u32 %v755, 7
        %v757 = vsub.s32 0, %v756
        %v758 = vrot.slane %v737, %v757
        %v760 = vmul.f32 %v753, %v758
        %v762 = vlaneseq
        %v763 = vshrl.u32 %v762, 7
        %v764 = vsub.s32 0, %v763
        %v765 = vrot.slane %v738, %v764
        %v767 = vadd.f32 %v760, %v765
        %v768 = vsel %vm739, %v736, 0.0
        %769 = vadd.xlane.f32.xlu0 %v768
        %v770 = vpop.xlane.xlu0 %769
        %v771 = vmul.f32 %v770, %v743
        %v772 = vsub.f32 %v736, %v771
        %v773 = vmul.f32 %v772, %v772
        %v774 = vsel %vm739, %v773, 0.0
        %775 = vadd.xlane.f32.xlu0 %v774
        %v776 = vpop.xlane.xlu0 %775
        %v777 = vmul.f32 %v776, %v743
        %v778 = vadd.f32 %v777, 1e-05
        %v779 = vrsqrt.pop %v778
        %v780 = vmul.f32 %v772, %v779
        %v781 = vmul.f32 %v780, %v758
        %v782 = vadd.f32 %v781, %v765
        %v783 = vpack.c.bf16 %v767, %v767
        %v784 = vpack.c.bf16 %v782, %v782
        %v785 = vld [vmem:[%s6] sm:$0xf]
        %v786 = vld [vmem:[%s6 + $0x4] sm:$0xf]
        %v787 = vld [vmem:[%s6 + $0x8] sm:$0xf]
        %v788 = vld [vmem:[%s6 + $0xc] sm:$0xf]
        %v789 = vld [vmem:[#allocation7] sm:$0x1]
        %v791 = vlaneseq
        %v792 = vshrl.u32 %v791, 7
        %v793 = vsub.s32 0, %v792
        %v794 = vrot.slane %v789, %v793
        %v800 = vunpack.c.l.b16 %v785
        %v801 = vunpack.c.l.b16 %v786
        %v802 = vunpack.c.l.b16 %v787
        %v803 = vunpack.c.l.b16 %v788
        %v804 = vpack.c.b16 %v801, %v800
        %v805 = vpack.c.b16 %v803, %v802
        %v809 = vsel %vm739, %v783, 0
        %811 = vmatprep.subr.bf16.mxu0 0
        %812 = vmatpush1.bf16.msra.mxu0 %v804
        %813 = vmatprep.subr.bf16.mxu0 0
        %814 = vmatpush1.bf16.msra.mxu0 %v805
        %815 = vmatprep.subr.bf16.mxu0 0
        %816 = vmatpush1.bf16.msra.mxu0 0
        %817 = vmatprep.subr.bf16.mxu0 0
        %818 = vmatpush1.bf16.msra.mxu0 0
        %819 = vmatprep.subr.bf16.mxu0 0
        %820 = vmatpush1.bf16.msra.mxu0 0
        %821 = vmatprep.subr.bf16.mxu0 0
        %822 = vmatpush1.bf16.msra.mxu0 0
        %823 = vmatprep.subr.bf16.mxu0 0
        %824 = vmatpush1.bf16.msra.mxu0 0
        %825 = vmatprep.subr.bf16.mxu0 0
        %826 = vmatpush1.bf16.msra.mxu0 0
        %827 = vmatprep.subr.bf16.mxu0 0
        %828 = vmatpush1.bf16.msra.mxu0 0
        %829 = vmatprep.subr.bf16.mxu0 0
        %830 = vmatpush1.bf16.msra.mxu0 0
        %831 = vmatprep.subr.bf16.mxu0 0
        %832 = vmatpush1.bf16.msra.mxu0 0
        %833 = vmatprep.subr.bf16.mxu0 0
        %834 = vmatpush1.bf16.msra.mxu0 0
        %835 = vmatprep.subr.bf16.mxu0 0
        %836 = vmatpush1.bf16.msra.mxu0 0
        %837 = vmatprep.subr.bf16.mxu0 0
        %838 = vmatpush1.bf16.msra.mxu0 0
        %839 = vmatprep.subr.bf16.mxu0 0
        %840 = vmatpush1.bf16.msra.mxu0 0
        %841 = vmatprep.subr.bf16.mxu0 0
        %842 = vmatpush1.bf16.msra.mxu0 0
        %843 = vmatprep.mubr.bf16.mxu0 0
        %844 = vmatmul.mubr.bf16.gmra.mrb[0].mxu0 %v809
        %v845 = vpop.f32.mrb[0].mxu0
        %v846 = vadd.f32 %v794, %v845
        %v847 = vpop.f32.mrb[0].mxu0
        %v848 = vpop.f32.mrb[0].mxu0
        %v849 = vpop.f32.mrb[0].mxu0
        %850 = vdwg.mxu0
        %v851 = vld [vmem:[%s7] sm:$0xf]
        %v852 = vld [vmem:[%s7 + $0x4] sm:$0xf]
        %v853 = vld [vmem:[%s7 + $0x8] sm:$0xf]
        %v854 = vld [vmem:[%s7 + $0xc] sm:$0xf]
        %v855 = vld [vmem:[#allocation9] sm:$0x1]
        %v857 = vlaneseq
        %v858 = vshrl.u32 %v857, 7
        %v859 = vsub.s32 0, %v858
        %v860 = vrot.slane %v855, %v859
        %v866 = vunpack.c.l.b16 %v851
        %v867 = vunpack.c.l.b16 %v852
        %v868 = vunpack.c.l.b16 %v853
        %v869 = vunpack.c.l.b16 %v854
        %v870 = vpack.c.b16 %v867, %v866
        %v871 = vpack.c.b16 %v869, %v868
        %v875 = vsel %vm739, %v784, 0
        %877 = vmatprep.subr.bf16.mxu0 0
        %878 = vmatpush1.bf16.msra.mxu0 %v870
        %879 = vmatprep.subr.bf16.mxu0 0
        %880 = vmatpush1.bf16.msra.mxu0 %v871
        %881 = vmatprep.subr.bf16.mxu0 0
        %882 = vmatpush1.bf16.msra.mxu0 0
        %883 = vmatprep.subr.bf16.mxu0 0
        %884 = vmatpush1.bf16.msra.mxu0 0
        %885 = vmatprep.subr.bf16.mxu0 0
        %886 = vmatpush1.bf16.msra.mxu0 0
        %887 = vmatprep.subr.bf16.mxu0 0
        %888 = vmatpush1.bf16.msra.mxu0 0
        %889 = vmatprep.subr.bf16.mxu0 0
        %890 = vmatpush1.bf16.msra.mxu0 0
        %891 = vmatprep.subr.bf16.mxu0 0
        %892 = vmatpush1.bf16.msra.mxu0 0
        %893 = vmatprep.subr.bf16.mxu0 0
        %894 = vmatpush1.bf16.msra.mxu0 0
        %895 = vmatprep.subr.bf16.mxu0 0
        %896 = vmatpush1.bf16.msra.mxu0 0
        %897 = vmatprep.subr.bf16.mxu0 0
        %898 = vmatpush1.bf16.msra.mxu0 0
        %899 = vmatprep.subr.bf16.mxu0 0
        %900 = vmatpush1.bf16.msra.mxu0 0
        %901 = vmatprep.subr.bf16.mxu0 0
        %902 = vmatpush1.bf16.msra.mxu0 0
        %903 = vmatprep.subr.bf16.mxu0 0
        %904 = vmatpush1.bf16.msra.mxu0 0
        %905 = vmatprep.subr.bf16.mxu0 0
        %906 = vmatpush1.bf16.msra.mxu0 0
        %907 = vmatprep.subr.bf16.mxu0 0
        %908 = vmatpush1.bf16.msra.mxu0 0
        %909 = vmatprep.mubr.bf16.mxu0 0
        %910 = vmatmul.mubr.bf16.gmra.mrb[0].mxu0 %v875
        %v911 = vpop.f32.mrb[0].mxu0
        %v912 = vadd.f32 %v860, %v911
        %v913 = vpop.f32.mrb[0].mxu0
        %v914 = vpop.f32.mrb[0].mxu0
        %v915 = vpop.f32.mrb[0].mxu0
        %916 = vdwg.mxu0
        %v917 = vld [vmem:[%s8] sm:$0xf]
        %v918 = vld [vmem:[%s8 + $0x4] sm:$0xf]
        %v919 = vld [vmem:[%s8 + $0x8] sm:$0xf]
        %v920 = vld [vmem:[%s8 + $0xc] sm:$0xf]
        %v921 = vld [vmem:[#allocation10] sm:$0x1]
        %v923 = vlaneseq
        %v924 = vshrl.u32 %v923, 7
        %v925 = vsub.s32 0, %v924
        %v926 = vrot.slane %v921, %v925
        %v932 = vunpack.c.l.b16 %v917
        %v933 = vunpack.c.l.b16 %v918
        %v934 = vunpack.c.l.b16 %v919
        %v935 = vunpack.c.l.b16 %v920
        %v936 = vpack.c.b16 %v933, %v932
        %v937 = vpack.c.b16 %v935, %v934
        %940 = vmatprep.subr.bf16.mxu0 0
        %941 = vmatpush1.bf16.msra.mxu0 %v936
        %942 = vmatprep.subr.bf16.mxu0 0
        %943 = vmatpush1.bf16.msra.mxu0 %v937
        %944 = vmatprep.subr.bf16.mxu0 0
        %945 = vmatpush1.bf16.msra.mxu0 0
        %946 = vmatprep.subr.bf16.mxu0 0
        %947 = vmatpush1.bf16.msra.mxu0 0
        %948 = vmatprep.subr.bf16.mxu0 0
        %949 = vmatpush1.bf16.msra.mxu0 0
        %950 = vmatprep.subr.bf16.mxu0 0
        %951 = vmatpush1.bf16.msra.mxu0 0
        %952 = vmatprep.subr.bf16.mxu0 0
        %953 = vmatpush1.bf16.msra.mxu0 0
        %954 = vmatprep.subr.bf16.mxu0 0
        %955 = vmatpush1.bf16.msra.mxu0 0
        %956 = vmatprep.subr.bf16.mxu0 0
        %957 = vmatpush1.bf16.msra.mxu0 0
        %958 = vmatprep.subr.bf16.mxu0 0
        %959 = vmatpush1.bf16.msra.mxu0 0
        %960 = vmatprep.subr.bf16.mxu0 0
        %961 = vmatpush1.bf16.msra.mxu0 0
        %962 = vmatprep.subr.bf16.mxu0 0
        %963 = vmatpush1.bf16.msra.mxu0 0
        %964 = vmatprep.subr.bf16.mxu0 0
        %965 = vmatpush1.bf16.msra.mxu0 0
        %966 = vmatprep.subr.bf16.mxu0 0
        %967 = vmatpush1.bf16.msra.mxu0 0
        %968 = vmatprep.subr.bf16.mxu0 0
        %969 = vmatpush1.bf16.msra.mxu0 0
        %970 = vmatprep.subr.bf16.mxu0 0
        %971 = vmatpush1.bf16.msra.mxu0 0
        %972 = vmatprep.mubr.bf16.mxu0 0
        %973 = vmatmul.mubr.bf16.gmra.mrb[0].mxu0 %v875
        %v974 = vpop.f32.mrb[0].mxu0
        %v975 = vadd.f32 %v926, %v974
        %v976 = vpop.f32.mrb[0].mxu0
        %v977 = vpop.f32.mrb[0].mxu0
        %v978 = vpop.f32.mrb[0].mxu0
        %979 = vdwg.mxu0
        %v980 = vpack.c.bf16 %v846, %v846
        %v981 = vpack.c.bf16 %v912, %v912
        %v982 = vpack.c.bf16 %v975, %v975
        %vm983 = vcmask 64512
        %v985 = vsel %vm983, %v980, 0
        %v988 = vsel %vm983, %v981, 0
        %990 = vmatprep.subr.bf16.mxu0 0
        %991 = vmatpush1.bf16.xpose.msra.mxu0 %v988
        %992 = vmatprep.subr.bf16.mxu0 0
        %993 = vmatpush1.bf16.xpose.msra.mxu0 0
        %994 = vmatprep.subr.bf16.mxu0 0
        %995 = vmatpush1.bf16.xpose.msra.mxu0 0
        %996 = vmatprep.subr.bf16.mxu0 0
        %997 = vmatpush1.bf16.xpose.msra.mxu0 0
        %998 = vmatprep.subr.bf16.mxu0 0
        %999 = vmatpush1.bf16.xpose.msra.mxu0 0
        %1000 = vmatprep.subr.bf16.mxu0 0
        %1001 = vmatpush1.bf16.xpose.msra.mxu0 0
        %1002 = vmatprep.subr.bf16.mxu0 0
        %1003 = vmatpush1.bf16.xpose.msra.mxu0 0
        %1004 = vmatprep.subr.bf16.mxu0 0
        %1005 = vmatpush1.bf16.xpose.msra.mxu0 0
        %1006 = vmatprep.subr.bf16.mxu0 0
        %1007 = vmatpush1.bf16.xpose.msra.mxu0 0
        %1008 = vmatprep.subr.bf16.mxu0 0
        %1009 = vmatpush1.bf16.xpose.msra.mxu0 0
        %1010 = vmatprep.subr.bf16.mxu0 0
        %1011 = vmatpush1.bf16.xpose.msra.mxu0 0
        %1012 = vmatprep.subr.bf16.mxu0 0
        %1013 = vmatpush1.bf16.xpose.msra.mxu0 0
        %1014 = vmatprep.subr.bf16.mxu0 0
        %1015 = vmatpush1.bf16.xpose.msra.mxu0 0
        %1016 = vmatprep.subr.bf16.mxu0 0
        %1017 = vmatpush1.bf16.xpose.msra.mxu0 0
        %1018 = vmatprep.subr.bf16.mxu0 0
        %1019 = vmatpush1.bf16.xpose.msra.mxu0 0
        %1020 = vmatprep.subr.bf16.mxu0 0
        %1021 = vmatpush1.bf16.xpose.msra.mxu0 0
        %1022 = vmatprep.mubr.bf16.mxu0 0
        %1023 = vmatmul.mubr.bf16.gmra.mrb[0].mxu0 %v985
        %v1024 = vpop.f32.mrb[0].mxu0
        %v1025 = vadd.f32 0.0, %v1024
        %v1026 = vpop.f32.mrb[0].mxu0
        %v1027 = vpop.f32.mrb[0].mxu0
        %v1028 = vpop.f32.mrb[0].mxu0
        %1029 = vdwg.mxu0
        %v1030 = vsel %vm983, %v1025, -inf
        %1031 = vmax.xlane.f32.xlu0 %v1030
        %v1032 = vpop.xlane.xlu0 %1031
        %v1033 = vsub.f32 %v1025, %v1032
        %v1034 = vmul.f32 %v1033, 1.442695
        %v1035 = vpow.pop %v1034
        %v1036 = vsel %vm983, %v1035, 0.0
        %1037 = vadd.xlane.f32.xlu0 %v1036
        %v1038 = vpop.xlane.xlu0 %1037
        %v1039 = vrcp.pop %v1038
        %v1040 = vmul.f32 %v1035, %v1039
        %v1041 = vpack.c.bf16 %v1040, %v1040
        %v1043 = vsel %vm983, %v1041, 0
        %vm1045 = vcmask 1043456
        %v1047 = vsel %vm1045, %v982, 0
        %1049 = vmatprep.subr.bf16.mxu0 0
        %1050 = vmatpush1.bf16.msra.mxu0 %v1047
        %1051 = vmatprep.subr.bf16.mxu0 0
        %1052 = vmatpush1.bf16.msra.mxu0 0
        %1053 = vmatprep.subr.bf16.mxu0 0
        %1054 = vmatpush1.bf16.msra.mxu0 0
        %1055 = vmatprep.subr.bf16.mxu0 0
        %1056 = vmatpush1.bf16.msra.mxu0 0
        %1057 = vmatprep.subr.bf16.mxu0 0
        %1058 = vmatpush1.bf16.msra.mxu0 0
        %1059 = vmatprep.subr.bf16.mxu0 0
        %1060 = vmatpush1.bf16.msra.mxu0 0
        %1061 = vmatprep.subr.bf16.mxu0 0
        %1062 = vmatpush1.bf16.msra.mxu0 0
        %1063 = vmatprep.subr.bf16.mxu0 0
        %1064 = vmatpush1.bf16.msra.mxu0 0
        %1065 = vmatprep.subr.bf16.mxu0 0
        %1066 = vmatpush1.bf16.msra.mxu0 0
        %1067 = vmatprep.subr.bf16.mxu0 0
        %1068 = vmatpush1.bf16.msra.mxu0 0
        %1069 = vmatprep.subr.bf16.mxu0 0
        %1070 = vmatpush1.bf16.msra.mxu0 0
        %1071 = vmatprep.subr.bf16.mxu0 0
        %1072 = vmatpush1.bf16.msra.mxu0 0
        %1073 = vmatprep.subr.bf16.mxu0 0
        %1074 = vmatpush1.bf16.msra.mxu0 0
        %1075 = vmatprep.subr.bf16.mxu0 0
        %1076 = vmatpush1.bf16.msra.mxu0 0
        %1077 = vmatprep.subr.bf16.mxu0 0
        %1078 = vmatpush1.bf16.msra.mxu0 0
        %1079 = vmatprep.subr.bf16.mxu0 0
        %1080 = vmatpush1.bf16.msra.mxu0 0
        %1081 = vmatprep.mubr.bf16.mxu0 0
        %1082 = vmatmul.mubr.bf16.gmra.mrb[0].mxu0 %v1043
        %v1083 = vpop.f32.mrb[0].mxu0
        %v1084 = vadd.f32 0.0, %v1083
        %v1085 = vpop.f32.mrb[0].mxu0
        %v1086 = vpop.f32.mrb[0].mxu0
        %v1087 = vpop.f32.mrb[0].mxu0
        %1088 = vdwg.mxu0
        %1090 = vrot.lane.b32.xlu0 %v980, 120
        %v1091 = vpop.permute.xlu0 %1090
        %1093 = vrot.lane.b32.xlu0 %v981, 120
        %v1094 = vpop.permute.xlu0 %1093
        %v1096 = vsel %vm983, %v1091, 0
        %v1099 = vsel %vm983, %v1094, 0
        %1101 = vmatprep.subr.bf16.mxu0 0
        %1102 = vmatpush1.bf16.xpose.msra.mxu0 %v1099
        %1103 = vmatprep.subr.bf16.mxu0 0
        %1104 = vmatpush1.bf16.xpose.msra.mxu0 0
        %1105 = vmatprep.subr.bf16.mxu0 0
        %1106 = vmatpush1.bf16.xpose.msra.mxu0 0
        %1107 = vmatprep.subr.bf16.mxu0 0
        %1108 = vmatpush1.bf16.xpose.msra.mxu0 0
        %1109 = vmatprep.subr.bf16.mxu0 0
        %1110 = vmatpush1.bf16.xpose.msra.mxu0 0
        %1111 = vmatprep.subr.bf16.mxu0 0
        %1112 = vmatpush1.bf16.xpose.msra.mxu0 0
        %1113 = vmatprep.subr.bf16.mxu0 0
        %1114 = vmatpush1.bf16.xpose.msra.mxu0 0
        %1115 = vmatprep.subr.bf16.mxu0 0
        %1116 = vmatpush1.bf16.xpose.msra.mxu0 0
        %1117 = vmatprep.subr.bf16.mxu0 0
        %1118 = vmatpush1.bf16.xpose.msra.mxu0 0
        %1119 = vmatprep.subr.bf16.mxu0 0
        %1120 = vmatpush1.bf16.xpose.msra.mxu0 0
        %1121 = vmatprep.subr.bf16.mxu0 0
        %1122 = vmatpush1.bf16.xpose.msra.mxu0 0
        %1123 = vmatprep.subr.bf16.mxu0 0
        %1124 = vmatpush1.bf16.xpose.msra.mxu0 0
        %1125 = vmatprep.subr.bf16.mxu0 0
        %1126 = vmatpush1.bf16.xpose.msra.mxu0 0
        %1127 = vmatprep.subr.bf16.mxu0 0
        %1128 = vmatpush1.bf16.xpose.msra.mxu0 0
        %1129 = vmatprep.subr.bf16.mxu0 0
        %1130 = vmatpush1.bf16.xpose.msra.mxu0 0
        %1131 = vmatprep.subr.bf16.mxu0 0
        %1132 = vmatpush1.bf16.xpose.msra.mxu0 0
        %1133 = vmatprep.mubr.bf16.mxu0 0
        %1134 = vmatmul.mubr.bf16.gmra.mrb[0].mxu0 %v1096
        %v1135 = vpop.f32.mrb[0].mxu0
        %v1136 = vadd.f32 0.0, %v1135
        %v1137 = vpop.f32.mrb[0].mxu0
        %v1138 = vpop.f32.mrb[0].mxu0
        %v1139 = vpop.f32.mrb[0].mxu0
        %1140 = vdwg.mxu0
        %v1141 = vsel %vm983, %v1136, -inf
        %1142 = vmax.xlane.f32.xlu0 %v1141
        %v1143 = vpop.xlane.xlu0 %1142
        %v1144 = vsub.f32 %v1136, %v1143
        %v1145 = vmul.f32 %v1144, 1.442695
        %v1146 = vpow.pop %v1145
        %v1147 = vsel %vm983, %v1146, 0.0
        %1148 = vadd.xlane.f32.xlu0 %v1147
        %v1149 = vpop.xlane.xlu0 %1148
        %v1150 = vrcp.pop %v1149
        %v1151 = vmul.f32 %v1146, %v1150
        %v1152 = vpack.c.bf16 %v1151, %v1151
        %1154 = vrot.lane.b32.xlu0 %v982, 120
        %v1155 = vpop.permute.xlu0 %1154
        %v1157 = vsel %vm983, %v1152, 0
        %v1160 = vsel %vm1045, %v1155, 0
        %1162 = vmatprep.subr.bf16.mxu0 0
        %1163 = vmatpush1.bf16.msra.mxu0 %v1160
        %1164 = vmatprep.subr.bf16.mxu0 0
        %1165 = vmatpush1.bf16.msra.mxu0 0
        %1166 = vmatprep.subr.bf16.mxu0 0
        %1167 = vmatpush1.bf16.msra.mxu0 0
        %1168 = vmatprep.subr.bf16.mxu0 0
        %1169 = vmatpush1.bf16.msra.mxu0 0
        %1170 = vmatprep.subr.bf16.mxu0 0
        %1171 = vmatpush1.bf16.msra.mxu0 0
        %1172 = vmatprep.subr.bf16.mxu0 0
        %1173 = vmatpush1.bf16.msra.mxu0 0
        %1174 = vmatprep.subr.bf16.mxu0 0
        %1175 = vmatpush1.bf16.msra.mxu0 0
        %1176 = vmatprep.subr.bf16.mxu0 0
        %1177 = vmatpush1.bf16.msra.mxu0 0
        %1178 = vmatprep.subr.bf16.mxu0 0
        %1179 = vmatpush1.bf16.msra.mxu0 0
        %1180 = vmatprep.subr.bf16.mxu0 0
        %1181 = vmatpush1.bf16.msra.mxu0 0
        %1182 = vmatprep.subr.bf16.mxu0 0
        %1183 = vmatpush1.bf16.msra.mxu0 0
        %1184 = vmatprep.subr.bf16.mxu0 0
        %1185 = vmatpush1.bf16.msra.mxu0 0
        %1186 = vmatprep.subr.bf16.mxu0 0
        %1187 = vmatpush1.bf16.msra.mxu0 0
        %1188 = vmatprep.subr.bf16.mxu0 0
        %1189 = vmatpush1.bf16.msra.mxu0 0
        %1190 = vmatprep.subr.bf16.mxu0 0
        %1191 = vmatpush1.bf16.msra.mxu0 0
        %1192 = vmatprep.subr.bf16.mxu0 0
        %1193 = vmatpush1.bf16.msra.mxu0 0
        %1194 = vmatprep.mubr.bf16.mxu0 0
        %1195 = vmatmul.mubr.bf16.gmra.mrb[0].mxu0 %v1157
        %v1196 = vpop.f32.mrb[0].mxu0
        %v1197 = vadd.f32 0.0, %v1196
        %v1198 = vpop.f32.mrb[0].mxu0
        %v1199 = vpop.f32.mrb[0].mxu0
        %v1200 = vpop.f32.mrb[0].mxu0
        %1201 = vdwg.mxu0
        %1202 = vrot.lane.b32.xlu0 %v980, 112
        %v1203 = vpop.permute.xlu0 %1202
        %1204 = vrot.lane.b32.xlu0 %v981, 112
        %v1205 = vpop.permute.xlu0 %1204
        %v1207 = vsel %vm983, %v1203, 0
        %v1210 = vsel %vm983, %v1205, 0
        %1212 = vmatprep.subr.bf16.mxu0 0
        %1213 = vmatpush1.bf16.xpose.msra.mxu0 %v1210
        %1214 = vmatprep.subr.bf16.mxu0 0
        %1215 = vmatpush1.bf16.xpose.msra.mxu0 0
        %1216 = vmatprep.subr.bf16.mxu0 0
        %1217 = vmatpush1.bf16.xpose.msra.mxu0 0
        %1218 = vmatprep.subr.bf16.mxu0 0
        %1219 = vmatpush1.bf16.xpose.msra.mxu0 0
        %1220 = vmatprep.subr.bf16.mxu0 0
        %1221 = vmatpush1.bf16.xpose.msra.mxu0 0
        %1222 = vmatprep.subr.bf16.mxu0 0
        %1223 = vmatpush1.bf16.xpose.msra.mxu0 0
        %1224 = vmatprep.subr.bf16.mxu0 0
        %1225 = vmatpush1.bf16.xpose.msra.mxu0 0
        %1226 = vmatprep.subr.bf16.mxu0 0
        %1227 = vmatpush1.bf16.xpose.msra.mxu0 0
        %1228 = vmatprep.subr.bf16.mxu0 0
        %1229 = vmatpush1.bf16.xpose.msra.mxu0 0
        %1230 = vmatprep.subr.bf16.mxu0 0
        %1231 = vmatpush1.bf16.xpose.msra.mxu0 0
        %1232 = vmatprep.subr.bf16.mxu0 0
        %1233 = vmatpush1.bf16.xpose.msra.mxu0 0
        %1234 = vmatprep.subr.bf16.mxu0 0
        %1235 = vmatpush1.bf16.xpose.msra.mxu0 0
        %1236 = vmatprep.subr.bf16.mxu0 0
        %1237 = vmatpush1.bf16.xpose.msra.mxu0 0
        %1238 = vmatprep.subr.bf16.mxu0 0
        %1239 = vmatpush1.bf16.xpose.msra.mxu0 0
        %1240 = vmatprep.subr.bf16.mxu0 0
        %1241 = vmatpush1.bf16.xpose.msra.mxu0 0
        %1242 = vmatprep.subr.bf16.mxu0 0
        %1243 = vmatpush1.bf16.xpose.msra.mxu0 0
        %1244 = vmatprep.mubr.bf16.mxu0 0
        %1245 = vmatmul.mubr.bf16.gmra.mrb[0].mxu0 %v1207
        %v1246 = vpop.f32.mrb[0].mxu0
        %v1247 = vadd.f32 0.0, %v1246
        %v1248 = vpop.f32.mrb[0].mxu0
        %v1249 = vpop.f32.mrb[0].mxu0
        %v1250 = vpop.f32.mrb[0].mxu0
        %1251 = vdwg.mxu0
        %v1252 = vsel %vm983, %v1247, -inf
        %1253 = vmax.xlane.f32.xlu0 %v1252
        %v1254 = vpop.xlane.xlu0 %1253
        %v1255 = vsub.f32 %v1247, %v1254
        %v1256 = vmul.f32 %v1255, 1.442695
        %v1257 = vpow.pop %v1256
        %v1258 = vsel %vm983, %v1257, 0.0
        %1259 = vadd.xlane.f32.xlu0 %v1258
        %v1260 = vpop.xlane.xlu0 %1259
        %v1261 = vrcp.pop %v1260
        %v1262 = vmul.f32 %v1257, %v1261
        %v1263 = vpack.c.bf16 %v1262, %v1262
        %1264 = vrot.lane.b32.xlu0 %v982, 112
        %v1265 = vpop.permute.xlu0 %1264
        %v1267 = vsel %vm983, %v1263, 0
        %v1270 = vsel %vm1045, %v1265, 0
        %1272 = vmatprep.subr.bf16.mxu0 0
        %1273 = vmatpush1.bf16.msra.mxu0 %v1270
        %1274 = vmatprep.subr.bf16.mxu0 0
        %1275 = vmatpush1.bf16.msra.mxu0 0
        %1276 = vmatprep.subr.bf16.mxu0 0
        %1277 = vmatpush1.bf16.msra.mxu0 0
        %1278 = vmatprep.subr.bf16.mxu0 0
        %1279 = vmatpush1.bf16.msra.mxu0 0
        %1280 = vmatprep.subr.bf16.mxu0 0
        %1281 = vmatpush1.bf16.msra.mxu0 0
        %1282 = vmatprep.subr.bf16.mxu0 0
        %1283 = vmatpush1.bf16.msra.mxu0 0
        %1284 = vmatprep.subr.bf16.mxu0 0
        %1285 = vmatpush1.bf16.msra.mxu0 0
        %1286 = vmatprep.subr.bf16.mxu0 0
        %1287 = vmatpush1.bf16.msra.mxu0 0
        %1288 = vmatprep.subr.bf16.mxu0 0
        %1289 = vmatpush1.bf16.msra.mxu0 0
        %1290 = vmatprep.subr.bf16.mxu0 0
        %1291 = vmatpush1.bf16.msra.mxu0 0
        %1292 = vmatprep.subr.bf16.mxu0 0
        %1293 = vmatpush1.bf16.msra.mxu0 0
        %1294 = vmatprep.subr.bf16.mxu0 0
        %1295 = vmatpush1.bf16.msra.mxu0 0
        %1296 = vmatprep.subr.bf16.mxu0 0
        %1297 = vmatpush1.bf16.msra.mxu0 0
        %1298 = vmatprep.subr.bf16.mxu0 0
        %1299 = vmatpush1.bf16.msra.mxu0 0
        %1300 = vmatprep.subr.bf16.mxu0 0
        %1301 = vmatpush1.bf16.msra.mxu0 0
        %1302 = vmatprep.subr.bf16.mxu0 0
        %1303 = vmatpush1.bf16.msra.mxu0 0
        %1304 = vmatprep.mubr.bf16.mxu0 0
        %1305 = vmatmul.mubr.bf16.gmra.mrb[0].mxu0 %v1267
        %v1306 = vpop.f32.mrb[0].mxu0
        %v1307 = vadd.f32 0.0, %v1306
        %v1308 = vpop.f32.mrb[0].mxu0
        %v1309 = vpop.f32.mrb[0].mxu0
        %v1310 = vpop.f32.mrb[0].mxu0
        %1311 = vdwg.mxu0
        %1312 = vrot.lane.b32.xlu0 %v980, 104
        %v1313 = vpop.permute.xlu0 %1312
        %1314 = vrot.lane.b32.xlu0 %v981, 104
        %v1315 = vpop.permute.xlu0 %1314
        %v1317 = vsel %vm983, %v1313, 0
        %v1320 = vsel %vm983, %v1315, 0
        %1322 = vmatprep.subr.bf16.mxu0 0
        %1323 = vmatpush1.bf16.xpose.msra.mxu0 %v1320
        %1324 = vmatprep.subr.bf16.mxu0 0
        %1325 = vmatpush1.bf16.xpose.msra.mxu0 0
        %1326 = vmatprep.subr.bf16.mxu0 0
        %1327 = vmatpush1.bf16.xpose.msra.mxu0 0
        %1328 = vmatprep.subr.bf16.mxu0 0
        %1329 = vmatpush1.bf16.xpose.msra.mxu0 0
        %1330 = vmatprep.subr.bf16.mxu0 0
        %1331 = vmatpush1.bf16.xpose.msra.mxu0 0
        %1332 = vmatprep.subr.bf16.mxu0 0
        %1333 = vmatpush1.bf16.xpose.msra.mxu0 0
        %1334 = vmatprep.subr.bf16.mxu0 0
        %1335 = vmatpush1.bf16.xpose.msra.mxu0 0
        %1336 = vmatprep.subr.bf16.mxu0 0
        %1337 = vmatpush1.bf16.xpose.msra.mxu0 0
        %1338 = vmatprep.subr.bf16.mxu0 0
        %1339 = vmatpush1.bf16.xpose.msra.mxu0 0
        %1340 = vmatprep.subr.bf16.mxu0 0
        %1341 = vmatpush1.bf16.xpose.msra.mxu0 0
        %1342 = vmatprep.subr.bf16.mxu0 0
        %1343 = vmatpush1.bf16.xpose.msra.mxu0 0
        %1344 = vmatprep.subr.bf16.mxu0 0
        %1345 = vmatpush1.bf16.xpose.msra.mxu0 0
        %1346 = vmatprep.subr.bf16.mxu0 0
        %1347 = vmatpush1.bf16.xpose.msra.mxu0 0
        %1348 = vmatprep.subr.bf16.mxu0 0
        %1349 = vmatpush1.bf16.xpose.msra.mxu0 0
        %1350 = vmatprep.subr.bf16.mxu0 0
        %1351 = vmatpush1.bf16.xpose.msra.mxu0 0
        %1352 = vmatprep.subr.bf16.mxu0 0
        %1353 = vmatpush1.bf16.xpose.msra.mxu0 0
        %1354 = vmatprep.mubr.bf16.mxu0 0
        %1355 = vmatmul.mubr.bf16.gmra.mrb[0].mxu0 %v1317
        %v1356 = vpop.f32.mrb[0].mxu0
        %v1357 = vadd.f32 0.0, %v1356
        %v1358 = vpop.f32.mrb[0].mxu0
        %v1359 = vpop.f32.mrb[0].mxu0
        %v1360 = vpop.f32.mrb[0].mxu0
        %1361 = vdwg.mxu0
        %v1362 = vsel %vm983, %v1357, -inf
        %1363 = vmax.xlane.f32.xlu0 %v1362
        %v1364 = vpop.xlane.xlu0 %1363
        %v1365 = vsub.f32 %v1357, %v1364
        %v1366 = vmul.f32 %v1365, 1.442695
        %v1367 = vpow.pop %v1366
        %v1368 = vsel %vm983, %v1367, 0.0
        %1369 = vadd.xlane.f32.xlu0 %v1368
        %v1370 = vpop.xlane.xlu0 %1369
        %v1371 = vrcp.pop %v1370
        %v1372 = vmul.f32 %v1367, %v1371
        %v1373 = vpack.c.bf16 %v1372, %v1372
        %1374 = vrot.lane.b32.xlu0 %v982, 104
        %v1375 = vpop.permute.xlu0 %1374
        %v1377 = vsel %vm983, %v1373, 0
        %v1380 = vsel %vm1045, %v1375, 0
        %1382 = vmatprep.subr.bf16.mxu0 0
        %1383 = vmatpush1.bf16.msra.mxu0 %v1380
        %1384 = vmatprep.subr.bf16.mxu0 0
        %1385 = vmatpush1.bf16.msra.mxu0 0
        %1386 = vmatprep.subr.bf16.mxu0 0
        %1387 = vmatpush1.bf16.msra.mxu0 0
        %1388 = vmatprep.subr.bf16.mxu0 0
        %1389 = vmatpush1.bf16.msra.mxu0 0
        %1390 = vmatprep.subr.bf16.mxu0 0
        %1391 = vmatpush1.bf16.msra.mxu0 0
        %1392 = vmatprep.subr.bf16.mxu0 0
        %1393 = vmatpush1.bf16.msra.mxu0 0
        %1394 = vmatprep.subr.bf16.mxu0 0
        %1395 = vmatpush1.bf16.msra.mxu0 0
        %1396 = vmatprep.subr.bf16.mxu0 0
        %1397 = vmatpush1.bf16.msra.mxu0 0
        %1398 = vmatprep.subr.bf16.mxu0 0
        %1399 = vmatpush1.bf16.msra.mxu0 0
        %1400 = vmatprep.subr.bf16.mxu0 0
        %1401 = vmatpush1.bf16.msra.mxu0 0
        %1402 = vmatprep.subr.bf16.mxu0 0
        %1403 = vmatpush1.bf16.msra.mxu0 0
        %1404 = vmatprep.subr.bf16.mxu0 0
        %1405 = vmatpush1.bf16.msra.mxu0 0
        %1406 = vmatprep.subr.bf16.mxu0 0
        %1407 = vmatpush1.bf16.msra.mxu0 0
        %1408 = vmatprep.subr.bf16.mxu0 0
        %1409 = vmatpush1.bf16.msra.mxu0 0
        %1410 = vmatprep.subr.bf16.mxu0 0
        %1411 = vmatpush1.bf16.msra.mxu0 0
        %1412 = vmatprep.subr.bf16.mxu0 0
        %1413 = vmatpush1.bf16.msra.mxu0 0
        %1414 = vmatprep.mubr.bf16.mxu0 0
        %1415 = vmatmul.mubr.bf16.gmra.mrb[0].mxu0 %v1377
        %v1416 = vpop.f32.mrb[0].mxu0
        %v1417 = vadd.f32 0.0, %v1416
        %v1418 = vpop.f32.mrb[0].mxu0
        %v1419 = vpop.f32.mrb[0].mxu0
        %v1420 = vpop.f32.mrb[0].mxu0
        %1421 = vdwg.mxu0
        %1423 = vrot.lane.b32.xlu0 %v1197, 8
        %v1424 = vpop.permute.xlu0 %1423
        %1427 = vrot.lane.b32.xlu0 %v1307, 16
        %v1428 = vpop.permute.xlu0 %1427
        %1431 = vrot.lane.b32.xlu0 %v1417, 24
        %v1432 = vpop.permute.xlu0 %1431
        %v1434 = vsel %vm983, %v1084, %v1424
        %vm1435 = vcmask 130048
        %v1436 = vsel %vm1435, %v1434, %v1428
        %vm1437 = vcmask 195584
        %v1438 = vsel %vm1437, %v1436, %v1432
        %v1439 = vpack.c.bf16 %v1438, %v1438
        %v1440 = vld [vmem:[%s12] sm:$0xf]
        %v1441 = vld [vmem:[%s12 + $0x4] sm:$0xf]
        %v1442 = vld [vmem:[%s12 + $0x8] sm:$0xf]
        %v1443 = vld [vmem:[%s12 + $0xc] sm:$0xf]
        %v1444 = vld [vmem:[#allocation12] sm:$0x1]
        %v1446 = vlaneseq
        %v1447 = vshrl.u32 %v1446, 7
        %v1448 = vsub.s32 0, %v1447
        %v1449 = vrot.slane %v1444, %v1448
        %v1455 = vunpack.c.l.b16 %v1440
        %v1456 = vunpack.c.l.b16 %v1441
        %v1457 = vunpack.c.l.b16 %v1442
        %v1458 = vunpack.c.l.b16 %v1443
        %v1459 = vpack.c.b16 %v1456, %v1455
        %v1460 = vpack.c.b16 %v1458, %v1457
        %v1464 = vsel %vm739, %v1439, 0
        %1466 = vmatprep.subr.bf16.mxu0 0
        %1467 = vmatpush1.bf16.msra.mxu0 %v1459
        %1468 = vmatprep.subr.bf16.mxu0 0
        %1469 = vmatpush1.bf16.msra.mxu0 %v1460
        %1470 = vmatprep.subr.bf16.mxu0 0
        %1471 = vmatpush1.bf16.msra.mxu0 0
        %1472 = vmatprep.subr.bf16.mxu0 0
        %1473 = vmatpush1.bf16.msra.mxu0 0
        %1474 = vmatprep.subr.bf16.mxu0 0
        %1475 = vmatpush1.bf16.msra.mxu0 0
        %1476 = vmatprep.subr.bf16.mxu0 0
        %1477 = vmatpush1.bf16.msra.mxu0 0
        %1478 = vmatprep.subr.bf16.mxu0 0
        %1479 = vmatpush1.bf16.msra.mxu0 0
        %1480 = vmatprep.subr.bf16.mxu0 0
        %1481 = vmatpush1.bf16.msra.mxu0 0
        %1482 = vmatprep.subr.bf16.mxu0 0
        %1483 = vmatpush1.bf16.msra.mxu0 0
        %1484 = vmatprep.subr.bf16.mxu0 0
        %1485 = vmatpush1.bf16.msra.mxu0 0
        %1486 = vmatprep.subr.bf16.mxu0 0
        %1487 = vmatpush1.bf16.msra.mxu0 0
        %1488 = vmatprep.subr.bf16.mxu0 0
        %1489 = vmatpush1.bf16.msra.mxu0 0
        %1490 = vmatprep.subr.bf16.mxu0 0
        %1491 = vmatpush1.bf16.msra.mxu0 0
        %1492 = vmatprep.subr.bf16.mxu0 0
        %1493 = vmatpush1.bf16.msra.mxu0 0
        %1494 = vmatprep.subr.bf16.mxu0 0
        %1495 = vmatpush1.bf16.msra.mxu0 0
        %1496 = vmatprep.subr.bf16.mxu0 0
        %1497 = vmatpush1.bf16.msra.mxu0 0
        %1498 = vmatprep.mubr.bf16.mxu0 0
        %1499 = vmatmul.mubr.bf16.gmra.mrb[0].mxu0 %v1464
        %v1500 = vpop.f32.mrb[0].mxu0
        %v1501 = vadd.f32 %v1449, %v1500
        %v1502 = vpop.f32.mrb[0].mxu0
        %v1503 = vpop.f32.mrb[0].mxu0
        %v1504 = vpop.f32.mrb[0].mxu0
        %1505 = vdwg.mxu0
        %v1506 = vstv %s733
        %v1507 = vmul.f32 %v1506, %v1501
        %v1508 = vadd.f32 %v735, %v1507
        %v1509 = vld [vmem:[%s14] sm:$0x1]
        %v1510 = vld [vmem:[%s15] sm:$0x1]
        %v1511 = vsel %vm739, %v1508, 0.0
        %1512 = vadd.xlane.f32.xlu0 %v1511
        %v1513 = vpop.xlane.xlu0 %1512
        %v1514 = vmul.f32 %v1513, %v743
        %v1515 = vsub.f32 %v1508, %v1514
        %v1516 = vmul.f32 %v1515, %v1515
        %v1517 = vsel %vm739, %v1516, 0.0
        %1518 = vadd.xlane.f32.xlu0 %v1517
        %v1519 = vpop.xlane.xlu0 %1518
        %v1520 = vmul.f32 %v1519, %v743
        %v1521 = vadd.f32 %v1520, 1e-05
        %v1522 = vrsqrt.pop %v1521
        %v1523 = vmul.f32 %v1515, %v1522
        %v1525 = vlaneseq
        %v1526 = vshrl.u32 %v1525, 7
        %v1527 = vsub.s32 0, %v1526
        %v1528 = vrot.slane %v1509, %v1527
        %v1530 = vmul.f32 %v1523, %v1528
        %v1532 = vlaneseq
        %v1533 = vshrl.u32 %v1532, 7
        %v1534 = vsub.s32 0, %v1533
        %v1535 = vrot.slane %v1510, %v1534
        %v1537 = vadd.f32 %v1530, %v1535
        %v1538 = vpack.c.bf16 %v1537, %v1537
        %v1539 = vld [vmem:[%s16] sm:$0xf]
        %v1540 = vld [vmem:[%s16 + $0x4] sm:$0xf]
        %v1541 = vld [vmem:[%s16 + $0x8] sm:$0xf]
        %v1542 = vld [vmem:[%s16 + $0xc] sm:$0xf]
        %v1543 = vld [vmem:[%s17] sm:$0x1]
        %v1545 = vlaneseq
        %v1546 = vshrl.u32 %v1545, 7
        %v1547 = vsub.s32 0, %v1546
        %v1548 = vrot.slane %v1543, %v1547
        %v1554 = vunpack.c.l.b16 %v1539
        %v1555 = vunpack.c.l.b16 %v1540
        %v1556 = vunpack.c.l.b16 %v1541
        %v1557 = vunpack.c.l.b16 %v1542
        %v1558 = vpack.c.b16 %v1555, %v1554
        %v1559 = vpack.c.b16 %v1557, %v1556
        %v1563 = vsel %vm739, %v1538, 0
        %1565 = vmatprep.subr.bf16.mxu0 0
        %1566 = vmatpush1.bf16.msra.mxu0 %v1558
        %1567 = vmatprep.subr.bf16.mxu0 0
        %1568 = vmatpush1.bf16.msra.mxu0 %v1559
        %1569 = vmatprep.subr.bf16.mxu0 0
        %1570 = vmatpush1.bf16.msra.mxu0 0
        %1571 = vmatprep.subr.bf16.mxu0 0
        %1572 = vmatpush1.bf16.msra.mxu0 0
        %1573 = vmatprep.subr.bf16.mxu0 0
        %1574 = vmatpush1.bf16.msra.mxu0 0
        %1575 = vmatprep.subr.bf16.mxu0 0
        %1576 = vmatpush1.bf16.msra.mxu0 0
        %1577 = vmatprep.subr.bf16.mxu0 0
        %1578 = vmatpush1.bf16.msra.mxu0 0
        %1579 = vmatprep.subr.bf16.mxu0 0
        %1580 = vmatpush1.bf16.msra.mxu0 0
        %1581 = vmatprep.subr.bf16.mxu0 0
        %1582 = vmatpush1.bf16.msra.mxu0 0
        %1583 = vmatprep.subr.bf16.mxu0 0
        %1584 = vmatpush1.bf16.msra.mxu0 0
        %1585 = vmatprep.subr.bf16.mxu0 0
        %1586 = vmatpush1.bf16.msra.mxu0 0
        %1587 = vmatprep.subr.bf16.mxu0 0
        %1588 = vmatpush1.bf16.msra.mxu0 0
        %1589 = vmatprep.subr.bf16.mxu0 0
        %1590 = vmatpush1.bf16.msra.mxu0 0
        %1591 = vmatprep.subr.bf16.mxu0 0
        %1592 = vmatpush1.bf16.msra.mxu0 0
        %1593 = vmatprep.subr.bf16.mxu0 0
        %1594 = vmatpush1.bf16.msra.mxu0 0
        %1595 = vmatprep.subr.bf16.mxu0 0
        %1596 = vmatpush1.bf16.msra.mxu0 0
        %1597 = vmatprep.mubr.bf16.mxu0 0
        %1598 = vmatmul.mubr.bf16.gmra.mrb[0].mxu0 %v1563
        %v1599 = vpop.f32.mrb[0].mxu0
        %v1600 = vadd.f32 %v1548, %v1599
        %v1601 = vpop.f32.mrb[0].mxu0
        %v1602 = vpop.f32.mrb[0].mxu0
        %v1603 = vpop.f32.mrb[0].mxu0
        %1604 = vdwg.mxu0
        %v1605 = vmul.f32 %v1600, 0.5
        %v1606 = vmul.f32 %v1600, 0.044715
        %v1607 = vmul.f32 %v1606, %v1600
        %v1608 = vmul.f32 %v1607, %v1600
        %v1609 = vadd.f32 %v1600, %v1608
        %v1610 = vmul.f32 %v1609, 0.7978846
        %v1611 = vtanh.pop %v1610
        %v1612 = vadd.f32 %v1611, 1.0
        %v1613 = vmul.f32 %v1605, %v1612
        %v1614 = vpack.c.bf16 %v1613, %v1613
        %v1615 = vld [vmem:[%s18] sm:$0xf]
        %v1616 = vld [vmem:[%s18 + $0x4] sm:$0xf]
        %v1617 = vld [vmem:[%s18 + $0x8] sm:$0xf]
        %v1618 = vld [vmem:[%s18 + $0xc] sm:$0xf]
        %v1619 = vld [vmem:[%s18 + $0x10] sm:$0xf]
        %v1620 = vld [vmem:[%s18 + $0x14] sm:$0xf]
        %v1621 = vld [vmem:[%s18 + $0x18] sm:$0xf]
        %v1622 = vld [vmem:[%s18 + $0x1c] sm:$0xf]
        %v1623 = vld [vmem:[%s18 + $0x20] sm:$0xf]
        %v1624 = vld [vmem:[%s18 + $0x24] sm:$0xf]
        %v1625 = vld [vmem:[%s18 + $0x28] sm:$0xf]
        %v1626 = vld [vmem:[%s18 + $0x2c] sm:$0xf]
        %v1627 = vld [vmem:[%s18 + $0x30] sm:$0xf]
        %v1628 = vld [vmem:[%s18 + $0x34] sm:$0xf]
        %v1629 = vld [vmem:[%s18 + $0x38] sm:$0xf]
        %v1630 = vld [vmem:[%s18 + $0x3c] sm:$0xf]
        %v1631 = vld [vmem:[%s19] sm:$0x1]
        %v1633 = vlaneseq
        %v1634 = vshrl.u32 %v1633, 7
        %v1635 = vsub.s32 0, %v1634
        %v1636 = vrot.slane %v1631, %v1635
        %v1654 = vunpack.c.l.b16 %v1615
        %v1655 = vunpack.c.l.b16 %v1616
        %v1656 = vunpack.c.l.b16 %v1617
        %v1657 = vunpack.c.l.b16 %v1618
        %v1658 = vunpack.c.l.b16 %v1619
        %v1659 = vunpack.c.l.b16 %v1620
        %v1660 = vunpack.c.l.b16 %v1621
        %v1661 = vunpack.c.l.b16 %v1622
        %v1662 = vunpack.c.l.b16 %v1623
        %v1663 = vunpack.c.l.b16 %v1624
        %v1664 = vunpack.c.l.b16 %v1625
        %v1665 = vunpack.c.l.b16 %v1626
        %v1666 = vunpack.c.l.b16 %v1627
        %v1667 = vunpack.c.l.b16 %v1628
        %v1668 = vunpack.c.l.b16 %v1629
        %v1669 = vunpack.c.l.b16 %v1630
        %v1670 = vpack.c.b16 %v1655, %v1654
        %v1671 = vpack.c.b16 %v1657, %v1656
        %v1672 = vpack.c.b16 %v1659, %v1658
        %v1673 = vpack.c.b16 %v1661, %v1660
        %v1674 = vpack.c.b16 %v1663, %v1662
        %v1675 = vpack.c.b16 %v1665, %v1664
        %v1676 = vpack.c.b16 %v1667, %v1666
        %v1677 = vpack.c.b16 %v1669, %v1668
        %1686 = vmatprep.subr.bf16.mxu0 0
        %1687 = vmatpush1.bf16.msra.mxu0 %v1670
        %1688 = vmatprep.subr.bf16.mxu0 0
        %1689 = vmatpush1.bf16.msra.mxu0 %v1671
        %1690 = vmatprep.subr.bf16.mxu0 0
        %1691 = vmatpush1.bf16.msra.mxu0 %v1672
        %1692 = vmatprep.subr.bf16.mxu0 0
        %1693 = vmatpush1.bf16.msra.mxu0 %v1673
        %1694 = vmatprep.subr.bf16.mxu0 0
        %1695 = vmatpush1.bf16.msra.mxu0 %v1674
        %1696 = vmatprep.subr.bf16.mxu0 0
        %1697 = vmatpush1.bf16.msra.mxu0 %v1675
        %1698 = vmatprep.subr.bf16.mxu0 0
        %1699 = vmatpush1.bf16.msra.mxu0 %v1676
        %1700 = vmatprep.subr.bf16.mxu0 0
        %1701 = vmatpush1.bf16.msra.mxu0 %v1677
        %1702 = vmatprep.subr.bf16.mxu0 0
        %1703 = vmatpush1.bf16.msra.mxu0 0
        %1704 = vmatprep.subr.bf16.mxu0 0
        %1705 = vmatpush1.bf16.msra.mxu0 0
        %1706 = vmatprep.subr.bf16.mxu0 0
        %1707 = vmatpush1.bf16.msra.mxu0 0
        %1708 = vmatprep.subr.bf16.mxu0 0
        %1709 = vmatpush1.bf16.msra.mxu0 0
        %1710 = vmatprep.subr.bf16.mxu0 0
        %1711 = vmatpush1.bf16.msra.mxu0 0
        %1712 = vmatprep.subr.bf16.mxu0 0
        %1713 = vmatpush1.bf16.msra.mxu0 0
        %1714 = vmatprep.subr.bf16.mxu0 0
        %1715 = vmatpush1.bf16.msra.mxu0 0
        %1716 = vmatprep.subr.bf16.mxu0 0
        %1717 = vmatpush1.bf16.msra.mxu0 0
        %1718 = vmatprep.mubr.bf16.mxu0 0
        %1719 = vmatmul.mubr.bf16.gmra.mrb[0].mxu0 %v1614
        %v1720 = vpop.f32.mrb[0].mxu0
        %v1721 = vadd.f32 %v1636, %v1720
        %v1722 = vpop.f32.mrb[0].mxu0
        %v1723 = vpop.f32.mrb[0].mxu0
        %v1724 = vpop.f32.mrb[0].mxu0
        %1725 = vdwg.mxu0
        %v1726 = vstv %s734
        %v1727 = vmul.f32 %v1726, %v1721
        %v1728 = vadd.f32 %v1508, %v1727
        %1729 = vst.msk [vmem:[%s720] sm:$0xff] %vm739, %v1728
        %s1730 = sand.u32 %s493, 1
        %s1731 = scalar_lea.sflag [#allocation6], %s1730
        %s1732 = sand.u32 %s493, 1
        %s1733 = smul.addr %s1732, 8
        %s1734 = scalar_lea.vmem [#allocation13], %s1733
        // Predicated region
        $region121: #{tpu_custom_call.1} parent=99 // pred_check
          %p1735 = pneg %p503
        $region122: #{tpu_custom_call.1} parent=99 // pred_check_branch
          %1737 = sbr.rel (%p1735) target = $region124
        $region123: #{tpu_custom_call.1} parent=99 // pred_region
          %s1739 = ssub.s32 128, 128
          %1740 = vsyncadd %s1731, %s1739
          %s1741 = sadd.s32 %s44, %s43
          %s1742 = smul.addr %s1741, 128
          %s1743 = scalar_lea.hbm %s20, %s1742
          %s1745 = sshll.u32 %s1734, 4
          %s1746 = int_to_ptr.vmem [resolvable:$true] %s1745
          %1748 = dma.vmem_to_hbm [thread:$0]  %s1746, 128, %s1743, %s1731
        $region124: #{tpu_custom_call.1} parent=99 // pred_fallthru
          _
      $region100: #{tpu_custom_call.1} parent=5 // pred_fallthru
        _
      %p1749 = scmp.le.s32.totalorder 2, %s34
      // Predicated region
      $region125: #{tpu_custom_call.1} parent=5 // pred_check
        %p1750 = pneg %p1749
      $region126: #{tpu_custom_call.1} parent=5 // pred_check_branch
        %1752 = sbr.rel (%p1750) target = $region128
      $region127: #{tpu_custom_call.1} parent=5 // pred_region
        %s1753 = ssub.s32 %s34, 2
        // Predicated region
        $region129: #{tpu_custom_call.1} parent=127 // pred_check
          %p1754 = pneg %p509
        $region130: #{tpu_custom_call.1} parent=127 // pred_check_branch
          %1756 = sbr.rel (%p1754) target = $region132
        $region131: #{tpu_custom_call.1} parent=127 // pred_region
          %s1757 = sand.u32 %s494, 1
          %s1758 = scalar_lea.sflag [#allocation6], %s1757
          %s1759 = sand.u32 %s494, 1
          %s1760 = smul.addr %s1759, 8
          %s1761 = scalar_lea.vmem [#allocation13], %s1760
          %1762 = dma.done %s1758, 128
        $region132: #{tpu_custom_call.1} parent=127 // pred_fallthru
          _
      $region128: #{tpu_custom_call.1} parent=5 // pred_fallthru
        _
    $region6: #{tpu_custom_call.1} parent=1 // loop_footer
      %s38 = sadd.s32 1, %s34
    $region7: #{tpu_custom_call.1} parent=1 // loop_footer_branch
      %33 = sbr.rel target = $region3
    $region8: #{tpu_custom_call.1} parent=1 // loop_exit
      _
    %1763 = vsyncpa [#allocation5], 1
    %s1764 = scalar_lea.sflag [#allocation5], 1
    %1765 = vsyncpa %s1764, 1
    %1766 = vsyncpa [#allocation8], 1
    %1767 = vsyncpa [#allocation11], 1
    %1768 = vsyncpa [#allocation6], 1
    %s1769 = scalar_lea.sflag [#allocation6], 1
    %1770 = vsyncpa %s1769, 1

</llo_original>
